<compile_context>
chip_gen: v7x
topology: tpu7x:2x2x1
jax: 0.10.0
libtpu: 0.0.40
codegen_flags: <defaults>
</compile_context>

<pallas_src>
import functools

import jax
import jax.numpy as jnp
from jax.experimental import pallas as pl
from jax.experimental.pallas import tpu as pltpu


# ----------------------------------------------------------------------------
# Fused kernel: conv3x3 -> ReLU -> conv3x3 -> ReLU -> fused 1x1 heads + sigmoid
# One grid step processes `nb` batch elements, entirely in VMEM.
# Layout: channel-major, pixel axis (H*W, multiple of 128) on lanes.
# ----------------------------------------------------------------------------
def _fused_kernel(mask_ref, x_ref, w1_ref, b1_ref, w2_ref, b2_ref,
                  wh_ref, bh_ref, o_ref, p1_ref, p2_ref,
                  *, H, W, cin, chid, nb):
    HW = H * W

    def write_taps(act, p_ref, rows, j):
        # act: (rows, HW) channel-major map of ONE batch element.
        # For tap k with offsets (oy, ox), the shifted image is a lane-roll of
        # the flattened pixel axis; boundary (zero-pad) positions are exactly
        # the mask==0 positions, so roll * mask reproduces "same" padding.
        for k in range(9):
            oy, ox = k // 3 - 1, k % 3 - 1
            off = oy * W + ox
            if off == 0:
                v = act                                    # centre tap: mask is all ones
            else:
                rolled = pltpu.roll(act, (-off) % HW, axis=1)   # rolled[p] = act[p + off]
                v = rolled * mask_ref[k:k + 1, :]
            # NOTE: every (k, j) block is rewritten each grid step -> no zero-init.
            p_ref[k * rows:(k + 1) * rows, j * HW:(j + 1) * HW] = v.astype(p_ref.dtype)

    # ---- conv1: im2col (9*cin, nb*HW) in VMEM, then a single MXU GEMM ----
    for j in range(nb):
        write_taps(x_ref[j], p1_ref, cin, j)
    h1 = jnp.dot(w1_ref[...], p1_ref[...].astype(jnp.bfloat16),
                 preferred_element_type=jnp.float32)          # (chid, nb*HW)
    h1 = jnp.maximum(h1 + b1_ref[...], 0.0)

    # ---- conv2: im2col (9*chid, nb*HW) bf16 (tile-aligned stores), one GEMM ----
    for j in range(nb):
        write_taps(h1[:, j * HW:(j + 1) * HW], p2_ref, chid, j)
    h2 = jnp.dot(w2_ref[...], p2_ref[...],
                 preferred_element_type=jnp.float32)          # (chid, nb*HW)
    h2 = jnp.maximum(h2 + b2_ref[...], 0.0)

    # ---- fused 1x1 heads: channel-major (nheads, nb*HW) GEMM + sigmoid ----
    y = jnp.dot(wh_ref[...], h2.astype(jnp.bfloat16),
                preferred_element_type=jnp.float32)           # (nheads, nb*HW)
    y = jax.nn.sigmoid(y + bh_ref[...])
    for j in range(nb):
        o_ref[j] = y[:, j * HW:(j + 1) * HW].astype(o_ref.dtype)


def _fused_forward(tap_masks, x_cm, w1, b1, w2, b2, wh, bh,
                   *, H, W, cin, chid, nheads):
    """x_cm: (N, cin, H*W) f32 channel-major input; returns (N, nheads, H*W)."""
    N = x_cm.shape[0]
    HW = H * W

    # Fold batch elements into the GEMM lane dimension, but keep >= 2 grid
    # steps (v7x has 2 TensorCores) and cap the per-step lane width.
    nb = 1
    max_nb = max(1, 2048 // HW)
    for cand in range(min(N // 2, max_nb), 0, -1):
        if N % cand == 0:
            nb = cand
            break
    grid = (N // nb,)

    kernel = functools.partial(_fused_kernel, H=H, W=W, cin=cin, chid=chid, nb=nb)

    flops = 2 * N * HW * (9 * cin * chid + 9 * chid * chid + chid * nheads)
    bytes_accessed = int(x_cm.size * 4 + N * nheads * HW * 4
                         + (w1.size + w2.size + wh.size) * 2
                         + (b1.size + b2.size + bh.size + tap_masks.size) * 4)

    return pl.pallas_call(
        kernel,
        out_shape=jax.ShapeDtypeStruct((N, nheads, HW), jnp.float32),
        grid=grid,
        in_specs=[
            pl.BlockSpec((9, HW), lambda g: (0, 0)),              # tap masks
            pl.BlockSpec((nb, cin, HW), lambda g: (g, 0, 0)),      # input
            pl.BlockSpec((chid, 9 * cin), lambda g: (0, 0)),       # W1 (ch-major)
            pl.BlockSpec((chid, 1), lambda g: (0, 0)),             # b1
            pl.BlockSpec((chid, 9 * chid), lambda g: (0, 0)),      # W2 (ch-major)
            pl.BlockSpec((chid, 1), lambda g: (0, 0)),             # b2
            pl.BlockSpec((nheads, chid), lambda g: (0, 0)),        # fused head W
            pl.BlockSpec((nheads, 1), lambda g: (0, 0)),           # fused head b
        ],
        out_specs=pl.BlockSpec((nb, nheads, HW), lambda g: (g, 0, 0)),
        scratch_shapes=[
            pltpu.VMEM((9 * cin, nb * HW), jnp.float32),    # conv1 patch matrix
            pltpu.VMEM((9 * chid, nb * HW), jnp.bfloat16),  # conv2 patch matrix
        ],
        compiler_params=pltpu.CompilerParams(
            dimension_semantics=("parallel",),
            vmem_limit_bytes=32 * 1024 * 1024),
        cost_estimate=pl.CostEstimate(
            flops=flops,
            transcendentals=N * HW * nheads,
            bytes_accessed=bytes_accessed),
    )(tap_masks, x_cm, w1, b1, w2, b2, wh, bh)


def _make_tap_masks(H, W):
    """(9, H*W) f32: mask[k, p] == 1 iff tap k of pixel p is inside the image."""
    hh = jnp.arange(H).reshape(H, 1)
    ww = jnp.arange(W).reshape(1, W)
    rows = []
    for k in range(9):
        oy, ox = k // 3 - 1, k % 3 - 1
        m = ((hh + oy >= 0) & (hh + oy < H) & (ww + ox >= 0) & (ww + ox < W))
        rows.append(m.astype(jnp.float32).reshape(H * W))
    return jnp.stack(rows, axis=0)


# ----------------------------------------------------------------------------
# The policy module (synthetic PFModel weights, deterministic init)
# ----------------------------------------------------------------------------
class PotentialFunctionSemanticPolicy:
    def __init__(self, cin=4, chid=32, num_objects=8, key=None):
        if key is None:
            key = jax.random.PRNGKey(42)
        k1, k2, k3, k4 = jax.random.split(key, 4)

        def conv_w(k, kh, kw, ci, co):
            fan_in = kh * kw * ci
            w = jax.random.normal(k, (kh, kw, ci, co), jnp.float32)
            return w * (2.0 / fan_in) ** 0.5

        self.cin, self.chid, self.num_objects = cin, chid, num_objects
        # fused head rows: num_objects pf channels + 1 area channel, padded to
        # a sublane multiple (8) for aligned channel-major output.
        self.nheads = ((num_objects + 1 + 7) // 8) * 8

        # Master f32 weights (HWIO) — used by the pure-JAX reference.
        self.w1_hwio = conv_w(k1, 3, 3, cin, chid)
        self.b1 = jnp.linspace(-0.1, 0.1, chid, dtype=jnp.float32)
        self.w2_hwio = conv_w(k2, 3, 3, chid, chid)
        self.b2 = jnp.linspace(0.05, -0.05, chid, dtype=jnp.float32)
        self.wpf = conv_w(k3, 1, 1, chid, num_objects).reshape(chid, num_objects)
        self.bpf = jnp.full((num_objects,), 0.01, jnp.float32)
        self.wa = conv_w(k4, 1, 1, chid, 1).reshape(chid, 1)
        self.ba = jnp.full((1,), -0.01, jnp.float32)

        # Kernel-side channel-major weights (bf16 for the MXU).
        # W1_cm[o, k*cin + c]  = w1_hwio[ky, kx, c, o],  k = ky*3 + kx
        self.w1_cm = (self.w1_hwio.reshape(9, cin, chid)
                      .transpose(2, 0, 1).reshape(chid, 9 * cin)
                      .astype(jnp.bfloat16))
        self.w2_cm = (self.w2_hwio.reshape(9, chid, chid)
                      .transpose(2, 0, 1).reshape(chid, 9 * chid)
                      .astype(jnp.bfloat16))
        wh = jnp.zeros((self.nheads, chid), jnp.float32)
        wh = wh.at[:num_objects].set(self.wpf.T)
        wh = wh.at[num_objects].set(self.wa[:, 0])
        self.wh_cm = wh.astype(jnp.bfloat16)
        bh = jnp.zeros((self.nheads,), jnp.float32)
        bh = bh.at[:num_objects].set(self.bpf)
        bh = bh.at[num_objects].set(self.ba[0])
        self.bh_col = bh.reshape(self.nheads, 1)
        self.b1_col = self.b1.reshape(chid, 1)
        self.b2_col = self.b2.reshape(chid, 1)

    def forward(self, inputs, rnn_hxs=None, masks=None, extras=None):
        # inputs: (N, C, H, W) float32 semantic map (NCHW, PyTorch convention).
        # rnn_hxs / masks / extras accepted but unused, as in the original.
        N, C, H, W = inputs.shape
        assert C == self.cin
        HW = H * W
        # Lane-roll im2col path requires the flattened pixel axis to be a
        # multiple of the 128-lane tile (16x16=256 OK).
        assert HW % 128 == 0, "H*W must be a multiple of 128"

        # NCHW is already channel-major: flattening to (N, C, H*W) is free
        # (no transpose, no halo pad, no extra HBM pass).
        x_cm = inputs.reshape(N, C, HW).astype(jnp.float32)
        tap_masks = _make_tap_masks(H, W)

        out = _fused_forward(
            tap_masks, x_cm, self.w1_cm, self.b1_col, self.w2_cm, self.b2_col,
            self.wh_cm, self.bh_col,
            H=H, W=W, cin=self.cin, chid=self.chid, nheads=self.nheads)

        out = out.reshape(N, self.nheads, H, W)               # already NCHW
        x_pf = out[:, :self.num_objects]
        x_a = out[:, self.num_objects:self.num_objects + 1]
        return x_pf, x_a

    __call__ = forward


# ----------------------------------------------------------------------------
# Pure-JAX reference (lax.conv, f32) for a sanity check of the Pallas path
# ----------------------------------------------------------------------------
def _reference_forward(policy, inputs):
    def conv3(x_nhwc, w_hwio, b):
        y = jax.lax.conv_general_dilated(
            x_nhwc, w_hwio, window_strides=(1, 1), padding="SAME",
            dimension_numbers=("NHWC", "HWIO", "NHWC"))
        return y + b.reshape(1, 1, 1, -1)

    x = jnp.transpose(inputs, (0, 2, 3, 1)).astype(jnp.float32)
    h1 = jax.nn.relu(conv3(x, policy.w1_hwio, policy.b1))
    h2 = jax.nn.relu(conv3(h1, policy.w2_hwio, policy.b2))
    pf = jax.nn.sigmoid(jnp.einsum("nhwc,co->nhwo", h2, policy.wpf) + policy.bpf)
    ar = jax.nn.sigmoid(jnp.einsum("nhwc,co->nhwo", h2, policy.wa) + policy.ba)
    return (jnp.transpose(pf, (0, 3, 1, 2)), jnp.transpose(ar, (0, 3, 1, 2)))


if __name__ == "__main__":
    key = jax.random.PRNGKey(0)
    N, C, H, W = 4, 4, 16, 16          # N=4 -> 2 grid steps of 2 folded elements
    inputs = jax.random.normal(key, (N, C, H, W), jnp.float32)
    rnn_hxs = jnp.zeros((N, 32), jnp.float32)
    masks = jnp.ones((N, 1), jnp.float32)
    extras = jnp.zeros((N, 2), jnp.float32)

    policy = PotentialFunctionSemanticPolicy(cin=C, chid=32, num_objects=8)

    x_pf, x_a = policy(inputs, rnn_hxs, masks, extras)
    x_pf = jax.block_until_ready(x_pf)
    x_a = jax.block_until_ready(x_a)

    assert x_pf.shape == (N, 8, H, W) and x_pf.dtype == jnp.float32
    assert x_a.shape == (N, 1, H, W) and x_a.dtype == jnp.float32

    ref_pf, ref_a = _reference_forward(policy, inputs)
    assert float(jnp.max(jnp.abs(x_pf - ref_pf))) < 5e-2
    assert float(jnp.max(jnp.abs(x_a - ref_a))) < 5e-2

    print("KERNEL_OK")
</pallas_src>

<mosaic_0001>
module attributes {stable_mosaic.version = 11 : i64} {
  func.func @_fused_kernel(%arg0: i32, %arg1: memref<9x256xf32, #tpu.memory_space<vmem>>, %arg2: memref<2x4x256xf32, #tpu.memory_space<vmem>>, %arg3: memref<32x36xbf16, #tpu.memory_space<vmem>>, %arg4: memref<32x1xf32, #tpu.memory_space<vmem>>, %arg5: memref<32x288xbf16, #tpu.memory_space<vmem>>, %arg6: memref<32x1xf32, #tpu.memory_space<vmem>>, %arg7: memref<16x32xbf16, #tpu.memory_space<vmem>>, %arg8: memref<16x1xf32, #tpu.memory_space<vmem>>, %arg9: memref<2x16x256xf32, #tpu.memory_space<vmem>>, %arg10: memref<36x512xf32, #tpu.memory_space<vmem>>, %arg11: memref<288x512xbf16, #tpu.memory_space<vmem>>) attributes {dimension_semantics = [#tpu.dimension_semantics<parallel>], iteration_bounds = array<i64: 2>, scalar_prefetch = 0 : i64, scratch_operands = 2 : i64, tpu.core_type = #tpu.core_type<tc>, window_params = [{pipeline_mode = #tpu.pipeline_mode<synchronous>, transform_indices = @transform_0, window_bounds = array<i64: 9, 256>}, {transform_indices = @transform_1, window_bounds = array<i64: 2, 4, 256>}, {pipeline_mode = #tpu.pipeline_mode<synchronous>, transform_indices = @transform_2, window_bounds = array<i64: 32, 36>}, {pipeline_mode = #tpu.pipeline_mode<synchronous>, transform_indices = @transform_3, window_bounds = array<i64: 32, 1>}, {pipeline_mode = #tpu.pipeline_mode<synchronous>, transform_indices = @transform_4, window_bounds = array<i64: 32, 288>}, {pipeline_mode = #tpu.pipeline_mode<synchronous>, transform_indices = @transform_5, window_bounds = array<i64: 32, 1>}, {pipeline_mode = #tpu.pipeline_mode<synchronous>, transform_indices = @transform_6, window_bounds = array<i64: 16, 32>}, {pipeline_mode = #tpu.pipeline_mode<synchronous>, transform_indices = @transform_7, window_bounds = array<i64: 16, 1>}, {transform_indices = @transform_8, window_bounds = array<i64: 2, 16, 256>}]} {
    %c0 = arith.constant 0 : index
    %c0_0 = arith.constant 0 : index
    %c0_1 = arith.constant 0 : index
    %0 = vector.load %arg2[%c0, %c0_0, %c0_1] : memref<2x4x256xf32, #tpu.memory_space<vmem>>, vector<1x4x256xf32>
    %1 = vector.shape_cast %0 : vector<1x4x256xf32> to vector<4x256xf32>
    %c17_i32 = arith.constant 17 : i32
    %2 = tpu.dynamic_rotate %1 by %c17_i32 dim 1 : vector<4x256xf32>, i32 -> vector<4x256xf32>
    %c0_2 = arith.constant 0 : index
    %c0_3 = arith.constant 0 : index
    %3 = vector.load %arg1[%c0_2, %c0_3] : memref<9x256xf32, #tpu.memory_space<vmem>>, vector<1x256xf32>
    %4 = vector.broadcast %3 : vector<1x256xf32> to vector<4x256xf32>
    %5 = arith.mulf %2, %4 : vector<4x256xf32>
    %c0_4 = arith.constant 0 : index
    %c0_5 = arith.constant 0 : index
    %6 = vector.load %arg10[%c0_4, %c0_5] : memref<36x512xf32, #tpu.memory_space<vmem>>, vector<4x256xf32>
    tpu.vector_store %arg10[%c0_4, %c0_5], %5 {strides = array<i32>} : memref<36x512xf32, #tpu.memory_space<vmem>>, vector<4x256xf32>,
    %c16_i32 = arith.constant 16 : i32
    %7 = tpu.dynamic_rotate %1 by %c16_i32 dim 1 : vector<4x256xf32>, i32 -> vector<4x256xf32>
    %c1 = arith.constant 1 : index
    %c0_6 = arith.constant 0 : index
    %8 = vector.load %arg1[%c1, %c0_6] : memref<9x256xf32, #tpu.memory_space<vmem>>, vector<1x256xf32>
    %9 = vector.broadcast %8 : vector<1x256xf32> to vector<4x256xf32>
    %10 = arith.mulf %7, %9 : vector<4x256xf32>
    %c4 = arith.constant 4 : index
    %c0_7 = arith.constant 0 : index
    %11 = vector.load %arg10[%c4, %c0_7] : memref<36x512xf32, #tpu.memory_space<vmem>>, vector<4x256xf32>
    tpu.vector_store %arg10[%c4, %c0_7], %10 {strides = array<i32>} : memref<36x512xf32, #tpu.memory_space<vmem>>, vector<4x256xf32>,
    %c15_i32 = arith.constant 15 : i32
    %12 = tpu.dynamic_rotate %1 by %c15_i32 dim 1 : vector<4x256xf32>, i32 -> vector<4x256xf32>
    %c2 = arith.constant 2 : index
    %c0_8 = arith.constant 0 : index
    %13 = vector.load %arg1[%c2, %c0_8] : memref<9x256xf32, #tpu.memory_space<vmem>>, vector<1x256xf32>
    %14 = vector.broadcast %13 : vector<1x256xf32> to vector<4x256xf32>
    %15 = arith.mulf %12, %14 : vector<4x256xf32>
    %c8 = arith.constant 8 : index
    %c0_9 = arith.constant 0 : index
    %16 = vector.load %arg10[%c8, %c0_9] : memref<36x512xf32, #tpu.memory_space<vmem>>, vector<4x256xf32>
    tpu.vector_store %arg10[%c8, %c0_9], %15 {strides = array<i32>} : memref<36x512xf32, #tpu.memory_space<vmem>>, vector<4x256xf32>,
    %c1_i32 = arith.constant 1 : i32
    %17 = tpu.dynamic_rotate %1 by %c1_i32 dim 1 : vector<4x256xf32>, i32 -> vector<4x256xf32>
    %c3 = arith.constant 3 : index
    %c0_10 = arith.constant 0 : index
    %18 = vector.load %arg1[%c3, %c0_10] : memref<9x256xf32, #tpu.memory_space<vmem>>, vector<1x256xf32>
    %19 = vector.broadcast %18 : vector<1x256xf32> to vector<4x256xf32>
    %20 = arith.mulf %17, %19 : vector<4x256xf32>
    %c12 = arith.constant 12 : index
    %c0_11 = arith.constant 0 : index
    %21 = vector.load %arg10[%c12, %c0_11] : memref<36x512xf32, #tpu.memory_space<vmem>>, vector<4x256xf32>
    tpu.vector_store %arg10[%c12, %c0_11], %20 {strides = array<i32>} : memref<36x512xf32, #tpu.memory_space<vmem>>, vector<4x256xf32>,
    %c16 = arith.constant 16 : index
    %c0_12 = arith.constant 0 : index
    %22 = vector.load %arg10[%c16, %c0_12] : memref<36x512xf32, #tpu.memory_space<vmem>>, vector<4x256xf32>
    tpu.vector_store %arg10[%c16, %c0_12], %1 {strides = array<i32>} : memref<36x512xf32, #tpu.memory_space<vmem>>, vector<4x256xf32>,
    %c255_i32 = arith.constant 255 : i32
    %23 = tpu.dynamic_rotate %1 by %c255_i32 dim 1 : vector<4x256xf32>, i32 -> vector<4x256xf32>
    %c5 = arith.constant 5 : index
    %c0_13 = arith.constant 0 : index
    %24 = vector.load %arg1[%c5, %c0_13] : memref<9x256xf32, #tpu.memory_space<vmem>>, vector<1x256xf32>
    %25 = vector.broadcast %24 : vector<1x256xf32> to vector<4x256xf32>
    %26 = arith.mulf %23, %25 : vector<4x256xf32>
    %c20 = arith.constant 20 : index
    %c0_14 = arith.constant 0 : index
    %27 = vector.load %arg10[%c20, %c0_14] : memref<36x512xf32, #tpu.memory_space<vmem>>, vector<4x256xf32>
    tpu.vector_store %arg10[%c20, %c0_14], %26 {strides = array<i32>} : memref<36x512xf32, #tpu.memory_space<vmem>>, vector<4x256xf32>,
    %c241_i32 = arith.constant 241 : i32
    %28 = tpu.dynamic_rotate %1 by %c241_i32 dim 1 : vector<4x256xf32>, i32 -> vector<4x256xf32>
    %c6 = arith.constant 6 : index
    %c0_15 = arith.constant 0 : index
    %29 = vector.load %arg1[%c6, %c0_15] : memref<9x256xf32, #tpu.memory_space<vmem>>, vector<1x256xf32>
    %30 = vector.broadcast %29 : vector<1x256xf32> to vector<4x256xf32>
    %31 = arith.mulf %28, %30 : vector<4x256xf32>
    %c24 = arith.constant 24 : index
    %c0_16 = arith.constant 0 : index
    %32 = vector.load %arg10[%c24, %c0_16] : memref<36x512xf32, #tpu.memory_space<vmem>>, vector<4x256xf32>
    tpu.vector_store %arg10[%c24, %c0_16], %31 {strides = array<i32>} : memref<36x512xf32, #tpu.memory_space<vmem>>, vector<4x256xf32>,
    %c240_i32 = arith.constant 240 : i32
    %33 = tpu.dynamic_rotate %1 by %c240_i32 dim 1 : vector<4x256xf32>, i32 -> vector<4x256xf32>
    %c7 = arith.constant 7 : index
    %c0_17 = arith.constant 0 : index
    %34 = vector.load %arg1[%c7, %c0_17] : memref<9x256xf32, #tpu.memory_space<vmem>>, vector<1x256xf32>
    %35 = vector.broadcast %34 : vector<1x256xf32> to vector<4x256xf32>
    %36 = arith.mulf %33, %35 : vector<4x256xf32>
    %c28 = arith.constant 28 : index
    %c0_18 = arith.constant 0 : index
    %37 = vector.load %arg10[%c28, %c0_18] : memref<36x512xf32, #tpu.memory_space<vmem>>, vector<4x256xf32>
    tpu.vector_store %arg10[%c28, %c0_18], %36 {strides = array<i32>} : memref<36x512xf32, #tpu.memory_space<vmem>>, vector<4x256xf32>,
    %c239_i32 = arith.constant 239 : i32
    %38 = tpu.dynamic_rotate %1 by %c239_i32 dim 1 : vector<4x256xf32>, i32 -> vector<4x256xf32>
    %c8_19 = arith.constant 8 : index
    %c0_20 = arith.constant 0 : index
    %39 = vector.load %arg1[%c8_19, %c0_20] : memref<9x256xf32, #tpu.memory_space<vmem>>, vector<1x256xf32>
    %40 = vector.broadcast %39 : vector<1x256xf32> to vector<4x256xf32>
    %41 = arith.mulf %38, %40 : vector<4x256xf32>
    %c32 = arith.constant 32 : index
    %c0_21 = arith.constant 0 : index
    %42 = vector.load %arg10[%c32, %c0_21] : memref<36x512xf32, #tpu.memory_space<vmem>>, vector<4x256xf32>
    tpu.vector_store %arg10[%c32, %c0_21], %41 {strides = array<i32>} : memref<36x512xf32, #tpu.memory_space<vmem>>, vector<4x256xf32>,
    %c1_22 = arith.constant 1 : index
    %c0_23 = arith.constant 0 : index
    %c0_24 = arith.constant 0 : index
    %43 = vector.load %arg2[%c1_22, %c0_23, %c0_24] : memref<2x4x256xf32, #tpu.memory_space<vmem>>, vector<1x4x256xf32>
    %44 = vector.shape_cast %43 : vector<1x4x256xf32> to vector<4x256xf32>
    %c17_i32_25 = arith.constant 17 : i32
    %45 = tpu.dynamic_rotate %44 by %c17_i32_25 dim 1 : vector<4x256xf32>, i32 -> vector<4x256xf32>
    %c0_26 = arith.constant 0 : index
    %c0_27 = arith.constant 0 : index
    %46 = vector.load %arg1[%c0_26, %c0_27] : memref<9x256xf32, #tpu.memory_space<vmem>>, vector<1x256xf32>
    %47 = vector.broadcast %46 : vector<1x256xf32> to vector<4x256xf32>
    %48 = arith.mulf %45, %47 : vector<4x256xf32>
    %c0_28 = arith.constant 0 : index
    %c256 = arith.constant 256 : index
    %49 = vector.load %arg10[%c0_28, %c256] : memref<36x512xf32, #tpu.memory_space<vmem>>, vector<4x256xf32>
    tpu.vector_store %arg10[%c0_28, %c256], %48 {strides = array<i32>} : memref<36x512xf32, #tpu.memory_space<vmem>>, vector<4x256xf32>,
    %c16_i32_29 = arith.constant 16 : i32
    %50 = tpu.dynamic_rotate %44 by %c16_i32_29 dim 1 : vector<4x256xf32>, i32 -> vector<4x256xf32>
    %c1_30 = arith.constant 1 : index
    %c0_31 = arith.constant 0 : index
    %51 = vector.load %arg1[%c1_30, %c0_31] : memref<9x256xf32, #tpu.memory_space<vmem>>, vector<1x256xf32>
    %52 = vector.broadcast %51 : vector<1x256xf32> to vector<4x256xf32>
    %53 = arith.mulf %50, %52 : vector<4x256xf32>
    %c4_32 = arith.constant 4 : index
    %c256_33 = arith.constant 256 : index
    %54 = vector.load %arg10[%c4_32, %c256_33] : memref<36x512xf32, #tpu.memory_space<vmem>>, vector<4x256xf32>
    tpu.vector_store %arg10[%c4_32, %c256_33], %53 {strides = array<i32>} : memref<36x512xf32, #tpu.memory_space<vmem>>, vector<4x256xf32>,
    %c15_i32_34 = arith.constant 15 : i32
    %55 = tpu.dynamic_rotate %44 by %c15_i32_34 dim 1 : vector<4x256xf32>, i32 -> vector<4x256xf32>
    %c2_35 = arith.constant 2 : index
    %c0_36 = arith.constant 0 : index
    %56 = vector.load %arg1[%c2_35, %c0_36] : memref<9x256xf32, #tpu.memory_space<vmem>>, vector<1x256xf32>
    %57 = vector.broadcast %56 : vector<1x256xf32> to vector<4x256xf32>
    %58 = arith.mulf %55, %57 : vector<4x256xf32>
    %c8_37 = arith.constant 8 : index
    %c256_38 = arith.constant 256 : index
    %59 = vector.load %arg10[%c8_37, %c256_38] : memref<36x512xf32, #tpu.memory_space<vmem>>, vector<4x256xf32>
    tpu.vector_store %arg10[%c8_37, %c256_38], %58 {strides = array<i32>} : memref<36x512xf32, #tpu.memory_space<vmem>>, vector<4x256xf32>,
    %c1_i32_39 = arith.constant 1 : i32
    %60 = tpu.dynamic_rotate %44 by %c1_i32_39 dim 1 : vector<4x256xf32>, i32 -> vector<4x256xf32>
    %c3_40 = arith.constant 3 : index
    %c0_41 = arith.constant 0 : index
    %61 = vector.load %arg1[%c3_40, %c0_41] : memref<9x256xf32, #tpu.memory_space<vmem>>, vector<1x256xf32>
    %62 = vector.broadcast %61 : vector<1x256xf32> to vector<4x256xf32>
    %63 = arith.mulf %60, %62 : vector<4x256xf32>
    %c12_42 = arith.constant 12 : index
    %c256_43 = arith.constant 256 : index
    %64 = vector.load %arg10[%c12_42, %c256_43] : memref<36x512xf32, #tpu.memory_space<vmem>>, vector<4x256xf32>
    tpu.vector_store %arg10[%c12_42, %c256_43], %63 {strides = array<i32>} : memref<36x512xf32, #tpu.memory_space<vmem>>, vector<4x256xf32>,
    %c16_44 = arith.constant 16 : index
    %c256_45 = arith.constant 256 : index
    %65 = vector.load %arg10[%c16_44, %c256_45] : memref<36x512xf32, #tpu.memory_space<vmem>>, vector<4x256xf32>
    tpu.vector_store %arg10[%c16_44, %c256_45], %44 {strides = array<i32>} : memref<36x512xf32, #tpu.memory_space<vmem>>, vector<4x256xf32>,
    %c255_i32_46 = arith.constant 255 : i32
    %66 = tpu.dynamic_rotate %44 by %c255_i32_46 dim 1 : vector<4x256xf32>, i32 -> vector<4x256xf32>
    %c5_47 = arith.constant 5 : index
    %c0_48 = arith.constant 0 : index
    %67 = vector.load %arg1[%c5_47, %c0_48] : memref<9x256xf32, #tpu.memory_space<vmem>>, vector<1x256xf32>
    %68 = vector.broadcast %67 : vector<1x256xf32> to vector<4x256xf32>
    %69 = arith.mulf %66, %68 : vector<4x256xf32>
    %c20_49 = arith.constant 20 : index
    %c256_50 = arith.constant 256 : index
    %70 = vector.load %arg10[%c20_49, %c256_50] : memref<36x512xf32, #tpu.memory_space<vmem>>, vector<4x256xf32>
    tpu.vector_store %arg10[%c20_49, %c256_50], %69 {strides = array<i32>} : memref<36x512xf32, #tpu.memory_space<vmem>>, vector<4x256xf32>,
    %c241_i32_51 = arith.constant 241 : i32
    %71 = tpu.dynamic_rotate %44 by %c241_i32_51 dim 1 : vector<4x256xf32>, i32 -> vector<4x256xf32>
    %c6_52 = arith.constant 6 : index
    %c0_53 = arith.constant 0 : index
    %72 = vector.load %arg1[%c6_52, %c0_53] : memref<9x256xf32, #tpu.memory_space<vmem>>, vector<1x256xf32>
    %73 = vector.broadcast %72 : vector<1x256xf32> to vector<4x256xf32>
    %74 = arith.mulf %71, %73 : vector<4x256xf32>
    %c24_54 = arith.constant 24 : index
    %c256_55 = arith.constant 256 : index
    %75 = vector.load %arg10[%c24_54, %c256_55] : memref<36x512xf32, #tpu.memory_space<vmem>>, vector<4x256xf32>
    tpu.vector_store %arg10[%c24_54, %c256_55], %74 {strides = array<i32>} : memref<36x512xf32, #tpu.memory_space<vmem>>, vector<4x256xf32>,
    %c240_i32_56 = arith.constant 240 : i32
    %76 = tpu.dynamic_rotate %44 by %c240_i32_56 dim 1 : vector<4x256xf32>, i32 -> vector<4x256xf32>
    %c7_57 = arith.constant 7 : index
    %c0_58 = arith.constant 0 : index
    %77 = vector.load %arg1[%c7_57, %c0_58] : memref<9x256xf32, #tpu.memory_space<vmem>>, vector<1x256xf32>
    %78 = vector.broadcast %77 : vector<1x256xf32> to vector<4x256xf32>
    %79 = arith.mulf %76, %78 : vector<4x256xf32>
    %c28_59 = arith.constant 28 : index
    %c256_60 = arith.constant 256 : index
    %80 = vector.load %arg10[%c28_59, %c256_60] : memref<36x512xf32, #tpu.memory_space<vmem>>, vector<4x256xf32>
    tpu.vector_store %arg10[%c28_59, %c256_60], %79 {strides = array<i32>} : memref<36x512xf32, #tpu.memory_space<vmem>>, vector<4x256xf32>,
    %c239_i32_61 = arith.constant 239 : i32
    %81 = tpu.dynamic_rotate %44 by %c239_i32_61 dim 1 : vector<4x256xf32>, i32 -> vector<4x256xf32>
    %c8_62 = arith.constant 8 : index
    %c0_63 = arith.constant 0 : index
    %82 = vector.load %arg1[%c8_62, %c0_63] : memref<9x256xf32, #tpu.memory_space<vmem>>, vector<1x256xf32>
    %83 = vector.broadcast %82 : vector<1x256xf32> to vector<4x256xf32>
    %84 = arith.mulf %81, %83 : vector<4x256xf32>
    %c32_64 = arith.constant 32 : index
    %c256_65 = arith.constant 256 : index
    %85 = vector.load %arg10[%c32_64, %c256_65] : memref<36x512xf32, #tpu.memory_space<vmem>>, vector<4x256xf32>
    tpu.vector_store %arg10[%c32_64, %c256_65], %84 {strides = array<i32>} : memref<36x512xf32, #tpu.memory_space<vmem>>, vector<4x256xf32>,
    %c0_66 = arith.constant 0 : index
    %c0_67 = arith.constant 0 : index
    %86 = vector.load %arg3[%c0_66, %c0_67] : memref<32x36xbf16, #tpu.memory_space<vmem>>, vector<32x36xbf16>
    %c0_68 = arith.constant 0 : index
    %c0_69 = arith.constant 0 : index
    %87 = vector.load %arg10[%c0_68, %c0_69] : memref<36x512xf32, #tpu.memory_space<vmem>>, vector<36x512xf32>
    %88 = arith.truncf %87 : vector<36x512xf32> to vector<36x512xbf16>
    %cst = arith.constant dense<0.000000e+00> : vector<32x512xf32>
    %89 = tpu.matmul %86, %88, %cst {dimension_numbers = #tpu.dot_dimension_numbers<[1], [0], [0], [1], [0, 0, 1, 1], [], []>} : vector<32x36xbf16>, vector<36x512xbf16>, vector<32x512xf32> -> vector<32x512xf32>
    %c0_70 = arith.constant 0 : index
    %c0_71 = arith.constant 0 : index
    %90 = vector.load %arg4[%c0_70, %c0_71] : memref<32x1xf32, #tpu.memory_space<vmem>>, vector<32x1xf32>
    %91 = vector.broadcast %90 : vector<32x1xf32> to vector<32x512xf32>
    %92 = arith.addf %89, %91 : vector<32x512xf32>
    %cst_72 = arith.constant 0.000000e+00 : f32
    %93 = vector.broadcast %cst_72 : f32 to vector<32x512xf32>
    %94 = arith.maximumf %92, %93 : vector<32x512xf32>
    %95 = vector.extract_strided_slice %94 {offsets = [0, 0], sizes = [32, 256], strides = [1, 1]} : vector<32x512xf32> to vector<32x256xf32>
    %c17_i32_73 = arith.constant 17 : i32
    %96 = tpu.dynamic_rotate %95 by %c17_i32_73 dim 1 : vector<32x256xf32>, i32 -> vector<32x256xf32>
    %c0_74 = arith.constant 0 : index
    %c0_75 = arith.constant 0 : index
    %97 = vector.load %arg1[%c0_74, %c0_75] : memref<9x256xf32, #tpu.memory_space<vmem>>, vector<1x256xf32>
    %98 = vector.broadcast %97 : vector<1x256xf32> to vector<32x256xf32>
    %99 = arith.mulf %96, %98 : vector<32x256xf32>
    %100 = arith.truncf %99 : vector<32x256xf32> to vector<32x256xbf16>
    %c0_76 = arith.constant 0 : index
    %c0_77 = arith.constant 0 : index
    %101 = vector.load %arg11[%c0_76, %c0_77] : memref<288x512xbf16, #tpu.memory_space<vmem>>, vector<32x256xbf16>
    tpu.vector_store %arg11[%c0_76, %c0_77], %100 {strides = array<i32>} : memref<288x512xbf16, #tpu.memory_space<vmem>>, vector<32x256xbf16>,
    %c16_i32_78 = arith.constant 16 : i32
    %102 = tpu.dynamic_rotate %95 by %c16_i32_78 dim 1 : vector<32x256xf32>, i32 -> vector<32x256xf32>
    %c1_79 = arith.constant 1 : index
    %c0_80 = arith.constant 0 : index
    %103 = vector.load %arg1[%c1_79, %c0_80] : memref<9x256xf32, #tpu.memory_space<vmem>>, vector<1x256xf32>
    %104 = vector.broadcast %103 : vector<1x256xf32> to vector<32x256xf32>
    %105 = arith.mulf %102, %104 : vector<32x256xf32>
    %106 = arith.truncf %105 : vector<32x256xf32> to vector<32x256xbf16>
    %c32_81 = arith.constant 32 : index
    %c0_82 = arith.constant 0 : index
    %107 = vector.load %arg11[%c32_81, %c0_82] : memref<288x512xbf16, #tpu.memory_space<vmem>>, vector<32x256xbf16>
    tpu.vector_store %arg11[%c32_81, %c0_82], %106 {strides = array<i32>} : memref<288x512xbf16, #tpu.memory_space<vmem>>, vector<32x256xbf16>,
    %c15_i32_83 = arith.constant 15 : i32
    %108 = tpu.dynamic_rotate %95 by %c15_i32_83 dim 1 : vector<32x256xf32>, i32 -> vector<32x256xf32>
    %c2_84 = arith.constant 2 : index
    %c0_85 = arith.constant 0 : index
    %109 = vector.load %arg1[%c2_84, %c0_85] : memref<9x256xf32, #tpu.memory_space<vmem>>, vector<1x256xf32>
    %110 = vector.broadcast %109 : vector<1x256xf32> to vector<32x256xf32>
    %111 = arith.mulf %108, %110 : vector<32x256xf32>
    %112 = arith.truncf %111 : vector<32x256xf32> to vector<32x256xbf16>
    %c64 = arith.constant 64 : index
    %c0_86 = arith.constant 0 : index
    %113 = vector.load %arg11[%c64, %c0_86] : memref<288x512xbf16, #tpu.memory_space<vmem>>, vector<32x256xbf16>
    tpu.vector_store %arg11[%c64, %c0_86], %112 {strides = array<i32>} : memref<288x512xbf16, #tpu.memory_space<vmem>>, vector<32x256xbf16>,
    %c1_i32_87 = arith.constant 1 : i32
    %114 = tpu.dynamic_rotate %95 by %c1_i32_87 dim 1 : vector<32x256xf32>, i32 -> vector<32x256xf32>
    %c3_88 = arith.constant 3 : index
    %c0_89 = arith.constant 0 : index
    %115 = vector.load %arg1[%c3_88, %c0_89] : memref<9x256xf32, #tpu.memory_space<vmem>>, vector<1x256xf32>
    %116 = vector.broadcast %115 : vector<1x256xf32> to vector<32x256xf32>
    %117 = arith.mulf %114, %116 : vector<32x256xf32>
    %118 = arith.truncf %117 : vector<32x256xf32> to vector<32x256xbf16>
    %c96 = arith.constant 96 : index
    %c0_90 = arith.constant 0 : index
    %119 = vector.load %arg11[%c96, %c0_90] : memref<288x512xbf16, #tpu.memory_space<vmem>>, vector<32x256xbf16>
    tpu.vector_store %arg11[%c96, %c0_90], %118 {strides = array<i32>} : memref<288x512xbf16, #tpu.memory_space<vmem>>, vector<32x256xbf16>,
    %120 = arith.truncf %95 : vector<32x256xf32> to vector<32x256xbf16>
    %c128 = arith.constant 128 : index
    %c0_91 = arith.constant 0 : index
    %121 = vector.load %arg11[%c128, %c0_91] : memref<288x512xbf16, #tpu.memory_space<vmem>>, vector<32x256xbf16>
    tpu.vector_store %arg11[%c128, %c0_91], %120 {strides = array<i32>} : memref<288x512xbf16, #tpu.memory_space<vmem>>, vector<32x256xbf16>,
    %c255_i32_92 = arith.constant 255 : i32
    %122 = tpu.dynamic_rotate %95 by %c255_i32_92 dim 1 : vector<32x256xf32>, i32 -> vector<32x256xf32>
    %c5_93 = arith.constant 5 : index
    %c0_94 = arith.constant 0 : index
    %123 = vector.load %arg1[%c5_93, %c0_94] : memref<9x256xf32, #tpu.memory_space<vmem>>, vector<1x256xf32>
    %124 = vector.broadcast %123 : vector<1x256xf32> to vector<32x256xf32>
    %125 = arith.mulf %122, %124 : vector<32x256xf32>
    %126 = arith.truncf %125 : vector<32x256xf32> to vector<32x256xbf16>
    %c160 = arith.constant 160 : index
    %c0_95 = arith.constant 0 : index
    %127 = vector.load %arg11[%c160, %c0_95] : memref<288x512xbf16, #tpu.memory_space<vmem>>, vector<32x256xbf16>
    tpu.vector_store %arg11[%c160, %c0_95], %126 {strides = array<i32>} : memref<288x512xbf16, #tpu.memory_space<vmem>>, vector<32x256xbf16>,
    %c241_i32_96 = arith.constant 241 : i32
    %128 = tpu.dynamic_rotate %95 by %c241_i32_96 dim 1 : vector<32x256xf32>, i32 -> vector<32x256xf32>
    %c6_97 = arith.constant 6 : index
    %c0_98 = arith.constant 0 : index
    %129 = vector.load %arg1[%c6_97, %c0_98] : memref<9x256xf32, #tpu.memory_space<vmem>>, vector<1x256xf32>
    %130 = vector.broadcast %129 : vector<1x256xf32> to vector<32x256xf32>
    %131 = arith.mulf %128, %130 : vector<32x256xf32>
    %132 = arith.truncf %131 : vector<32x256xf32> to vector<32x256xbf16>
    %c192 = arith.constant 192 : index
    %c0_99 = arith.constant 0 : index
    %133 = vector.load %arg11[%c192, %c0_99] : memref<288x512xbf16, #tpu.memory_space<vmem>>, vector<32x256xbf16>
    tpu.vector_store %arg11[%c192, %c0_99], %132 {strides = array<i32>} : memref<288x512xbf16, #tpu.memory_space<vmem>>, vector<32x256xbf16>,
    %c240_i32_100 = arith.constant 240 : i32
    %134 = tpu.dynamic_rotate %95 by %c240_i32_100 dim 1 : vector<32x256xf32>, i32 -> vector<32x256xf32>
    %c7_101 = arith.constant 7 : index
    %c0_102 = arith.constant 0 : index
    %135 = vector.load %arg1[%c7_101, %c0_102] : memref<9x256xf32, #tpu.memory_space<vmem>>, vector<1x256xf32>
    %136 = vector.broadcast %135 : vector<1x256xf32> to vector<32x256xf32>
    %137 = arith.mulf %134, %136 : vector<32x256xf32>
    %138 = arith.truncf %137 : vector<32x256xf32> to vector<32x256xbf16>
    %c224 = arith.constant 224 : index
    %c0_103 = arith.constant 0 : index
    %139 = vector.load %arg11[%c224, %c0_103] : memref<288x512xbf16, #tpu.memory_space<vmem>>, vector<32x256xbf16>
    tpu.vector_store %arg11[%c224, %c0_103], %138 {strides = array<i32>} : memref<288x512xbf16, #tpu.memory_space<vmem>>, vector<32x256xbf16>,
    %c239_i32_104 = arith.constant 239 : i32
    %140 = tpu.dynamic_rotate %95 by %c239_i32_104 dim 1 : vector<32x256xf32>, i32 -> vector<32x256xf32>
    %c8_105 = arith.constant 8 : index
    %c0_106 = arith.constant 0 : index
    %141 = vector.load %arg1[%c8_105, %c0_106] : memref<9x256xf32, #tpu.memory_space<vmem>>, vector<1x256xf32>
    %142 = vector.broadcast %141 : vector<1x256xf32> to vector<32x256xf32>
    %143 = arith.mulf %140, %142 : vector<32x256xf32>
    %144 = arith.truncf %143 : vector<32x256xf32> to vector<32x256xbf16>
    %c256_107 = arith.constant 256 : index
    %c0_108 = arith.constant 0 : index
    %145 = vector.load %arg11[%c256_107, %c0_108] : memref<288x512xbf16, #tpu.memory_space<vmem>>, vector<32x256xbf16>
    tpu.vector_store %arg11[%c256_107, %c0_108], %144 {strides = array<i32>} : memref<288x512xbf16, #tpu.memory_space<vmem>>, vector<32x256xbf16>,
    %146 = vector.extract_strided_slice %94 {offsets = [0, 256], sizes = [32, 256], strides = [1, 1]} : vector<32x512xf32> to vector<32x256xf32>
    %c17_i32_109 = arith.constant 17 : i32
    %147 = tpu.dynamic_rotate %146 by %c17_i32_109 dim 1 : vector<32x256xf32>, i32 -> vector<32x256xf32>
    %c0_110 = arith.constant 0 : index
    %c0_111 = arith.constant 0 : index
    %148 = vector.load %arg1[%c0_110, %c0_111] : memref<9x256xf32, #tpu.memory_space<vmem>>, vector<1x256xf32>
    %149 = vector.broadcast %148 : vector<1x256xf32> to vector<32x256xf32>
    %150 = arith.mulf %147, %149 : vector<32x256xf32>
    %151 = arith.truncf %150 : vector<32x256xf32> to vector<32x256xbf16>
    %c0_112 = arith.constant 0 : index
    %c256_113 = arith.constant 256 : index
    %152 = vector.load %arg11[%c0_112, %c256_113] : memref<288x512xbf16, #tpu.memory_space<vmem>>, vector<32x256xbf16>
    tpu.vector_store %arg11[%c0_112, %c256_113], %151 {strides = array<i32>} : memref<288x512xbf16, #tpu.memory_space<vmem>>, vector<32x256xbf16>,
    %c16_i32_114 = arith.constant 16 : i32
    %153 = tpu.dynamic_rotate %146 by %c16_i32_114 dim 1 : vector<32x256xf32>, i32 -> vector<32x256xf32>
    %c1_115 = arith.constant 1 : index
    %c0_116 = arith.constant 0 : index
    %154 = vector.load %arg1[%c1_115, %c0_116] : memref<9x256xf32, #tpu.memory_space<vmem>>, vector<1x256xf32>
    %155 = vector.broadcast %154 : vector<1x256xf32> to vector<32x256xf32>
    %156 = arith.mulf %153, %155 : vector<32x256xf32>
    %157 = arith.truncf %156 : vector<32x256xf32> to vector<32x256xbf16>
    %c32_117 = arith.constant 32 : index
    %c256_118 = arith.constant 256 : index
    %158 = vector.load %arg11[%c32_117, %c256_118] : memref<288x512xbf16, #tpu.memory_space<vmem>>, vector<32x256xbf16>
    tpu.vector_store %arg11[%c32_117, %c256_118], %157 {strides = array<i32>} : memref<288x512xbf16, #tpu.memory_space<vmem>>, vector<32x256xbf16>,
    %c15_i32_119 = arith.constant 15 : i32
    %159 = tpu.dynamic_rotate %146 by %c15_i32_119 dim 1 : vector<32x256xf32>, i32 -> vector<32x256xf32>
    %c2_120 = arith.constant 2 : index
    %c0_121 = arith.constant 0 : index
    %160 = vector.load %arg1[%c2_120, %c0_121] : memref<9x256xf32, #tpu.memory_space<vmem>>, vector<1x256xf32>
    %161 = vector.broadcast %160 : vector<1x256xf32> to vector<32x256xf32>
    %162 = arith.mulf %159, %161 : vector<32x256xf32>
    %163 = arith.truncf %162 : vector<32x256xf32> to vector<32x256xbf16>
    %c64_122 = arith.constant 64 : index
    %c256_123 = arith.constant 256 : index
    %164 = vector.load %arg11[%c64_122, %c256_123] : memref<288x512xbf16, #tpu.memory_space<vmem>>, vector<32x256xbf16>
    tpu.vector_store %arg11[%c64_122, %c256_123], %163 {strides = array<i32>} : memref<288x512xbf16, #tpu.memory_space<vmem>>, vector<32x256xbf16>,
    %c1_i32_124 = arith.constant 1 : i32
    %165 = tpu.dynamic_rotate %146 by %c1_i32_124 dim 1 : vector<32x256xf32>, i32 -> vector<32x256xf32>
    %c3_125 = arith.constant 3 : index
    %c0_126 = arith.constant 0 : index
    %166 = vector.load %arg1[%c3_125, %c0_126] : memref<9x256xf32, #tpu.memory_space<vmem>>, vector<1x256xf32>
    %167 = vector.broadcast %166 : vector<1x256xf32> to vector<32x256xf32>
    %168 = arith.mulf %165, %167 : vector<32x256xf32>
    %169 = arith.truncf %168 : vector<32x256xf32> to vector<32x256xbf16>
    %c96_127 = arith.constant 96 : index
    %c256_128 = arith.constant 256 : index
    %170 = vector.load %arg11[%c96_127, %c256_128] : memref<288x512xbf16, #tpu.memory_space<vmem>>, vector<32x256xbf16>
    tpu.vector_store %arg11[%c96_127, %c256_128], %169 {strides = array<i32>} : memref<288x512xbf16, #tpu.memory_space<vmem>>, vector<32x256xbf16>,
    %171 = arith.truncf %146 : vector<32x256xf32> to vector<32x256xbf16>
    %c128_129 = arith.constant 128 : index
    %c256_130 = arith.constant 256 : index
    %172 = vector.load %arg11[%c128_129, %c256_130] : memref<288x512xbf16, #tpu.memory_space<vmem>>, vector<32x256xbf16>
    tpu.vector_store %arg11[%c128_129, %c256_130], %171 {strides = array<i32>} : memref<288x512xbf16, #tpu.memory_space<vmem>>, vector<32x256xbf16>,
    %c255_i32_131 = arith.constant 255 : i32
    %173 = tpu.dynamic_rotate %146 by %c255_i32_131 dim 1 : vector<32x256xf32>, i32 -> vector<32x256xf32>
    %c5_132 = arith.constant 5 : index
    %c0_133 = arith.constant 0 : index
    %174 = vector.load %arg1[%c5_132, %c0_133] : memref<9x256xf32, #tpu.memory_space<vmem>>, vector<1x256xf32>
    %175 = vector.broadcast %174 : vector<1x256xf32> to vector<32x256xf32>
    %176 = arith.mulf %173, %175 : vector<32x256xf32>
    %177 = arith.truncf %176 : vector<32x256xf32> to vector<32x256xbf16>
    %c160_134 = arith.constant 160 : index
    %c256_135 = arith.constant 256 : index
    %178 = vector.load %arg11[%c160_134, %c256_135] : memref<288x512xbf16, #tpu.memory_space<vmem>>, vector<32x256xbf16>
    tpu.vector_store %arg11[%c160_134, %c256_135], %177 {strides = array<i32>} : memref<288x512xbf16, #tpu.memory_space<vmem>>, vector<32x256xbf16>,
    %c241_i32_136 = arith.constant 241 : i32
    %179 = tpu.dynamic_rotate %146 by %c241_i32_136 dim 1 : vector<32x256xf32>, i32 -> vector<32x256xf32>
    %c6_137 = arith.constant 6 : index
    %c0_138 = arith.constant 0 : index
    %180 = vector.load %arg1[%c6_137, %c0_138] : memref<9x256xf32, #tpu.memory_space<vmem>>, vector<1x256xf32>
    %181 = vector.broadcast %180 : vector<1x256xf32> to vector<32x256xf32>
    %182 = arith.mulf %179, %181 : vector<32x256xf32>
    %183 = arith.truncf %182 : vector<32x256xf32> to vector<32x256xbf16>
    %c192_139 = arith.constant 192 : index
    %c256_140 = arith.constant 256 : index
    %184 = vector.load %arg11[%c192_139, %c256_140] : memref<288x512xbf16, #tpu.memory_space<vmem>>, vector<32x256xbf16>
    tpu.vector_store %arg11[%c192_139, %c256_140], %183 {strides = array<i32>} : memref<288x512xbf16, #tpu.memory_space<vmem>>, vector<32x256xbf16>,
    %c240_i32_141 = arith.constant 240 : i32
    %185 = tpu.dynamic_rotate %146 by %c240_i32_141 dim 1 : vector<32x256xf32>, i32 -> vector<32x256xf32>
    %c7_142 = arith.constant 7 : index
    %c0_143 = arith.constant 0 : index
    %186 = vector.load %arg1[%c7_142, %c0_143] : memref<9x256xf32, #tpu.memory_space<vmem>>, vector<1x256xf32>
    %187 = vector.broadcast %186 : vector<1x256xf32> to vector<32x256xf32>
    %188 = arith.mulf %185, %187 : vector<32x256xf32>
    %189 = arith.truncf %188 : vector<32x256xf32> to vector<32x256xbf16>
    %c224_144 = arith.constant 224 : index
    %c256_145 = arith.constant 256 : index
    %190 = vector.load %arg11[%c224_144, %c256_145] : memref<288x512xbf16, #tpu.memory_space<vmem>>, vector<32x256xbf16>
    tpu.vector_store %arg11[%c224_144, %c256_145], %189 {strides = array<i32>} : memref<288x512xbf16, #tpu.memory_space<vmem>>, vector<32x256xbf16>,
    %c239_i32_146 = arith.constant 239 : i32
    %191 = tpu.dynamic_rotate %146 by %c239_i32_146 dim 1 : vector<32x256xf32>, i32 -> vector<32x256xf32>
    %c8_147 = arith.constant 8 : index
    %c0_148 = arith.constant 0 : index
    %192 = vector.load %arg1[%c8_147, %c0_148] : memref<9x256xf32, #tpu.memory_space<vmem>>, vector<1x256xf32>
    %193 = vector.broadcast %192 : vector<1x256xf32> to vector<32x256xf32>
    %194 = arith.mulf %191, %193 : vector<32x256xf32>
    %195 = arith.truncf %194 : vector<32x256xf32> to vector<32x256xbf16>
    %c256_149 = arith.constant 256 : index
    %c256_150 = arith.constant 256 : index
    %196 = vector.load %arg11[%c256_149, %c256_150] : memref<288x512xbf16, #tpu.memory_space<vmem>>, vector<32x256xbf16>
    tpu.vector_store %arg11[%c256_149, %c256_150], %195 {strides = array<i32>} : memref<288x512xbf16, #tpu.memory_space<vmem>>, vector<32x256xbf16>,
    %c0_151 = arith.constant 0 : index
    %c0_152 = arith.constant 0 : index
    %197 = vector.load %arg5[%c0_151, %c0_152] : memref<32x288xbf16, #tpu.memory_space<vmem>>, vector<32x288xbf16>
    %c0_153 = arith.constant 0 : index
    %c0_154 = arith.constant 0 : index
    %198 = vector.load %arg11[%c0_153, %c0_154] : memref<288x512xbf16, #tpu.memory_space<vmem>>, vector<288x512xbf16>
    %cst_155 = arith.constant dense<0.000000e+00> : vector<32x512xf32>
    %199 = tpu.matmul %197, %198, %cst_155 {dimension_numbers = #tpu.dot_dimension_numbers<[1], [0], [0], [1], [0, 0, 1, 1], [], []>} : vector<32x288xbf16>, vector<288x512xbf16>, vector<32x512xf32> -> vector<32x512xf32>
    %c0_156 = arith.constant 0 : index
    %c0_157 = arith.constant 0 : index
    %200 = vector.load %arg6[%c0_156, %c0_157] : memref<32x1xf32, #tpu.memory_space<vmem>>, vector<32x1xf32>
    %201 = vector.broadcast %200 : vector<32x1xf32> to vector<32x512xf32>
    %202 = arith.addf %199, %201 : vector<32x512xf32>
    %cst_158 = arith.constant 0.000000e+00 : f32
    %203 = vector.broadcast %cst_158 : f32 to vector<32x512xf32>
    %204 = arith.maximumf %202, %203 : vector<32x512xf32>
    %c0_159 = arith.constant 0 : index
    %c0_160 = arith.constant 0 : index
    %205 = vector.load %arg7[%c0_159, %c0_160] : memref<16x32xbf16, #tpu.memory_space<vmem>>, vector<16x32xbf16>
    %206 = arith.truncf %204 : vector<32x512xf32> to vector<32x512xbf16>
    %cst_161 = arith.constant dense<0.000000e+00> : vector<16x512xf32>
    %207 = tpu.matmul %205, %206, %cst_161 {dimension_numbers = #tpu.dot_dimension_numbers<[1], [0], [0], [1], [0, 0, 1, 1], [], []>} : vector<16x32xbf16>, vector<32x512xbf16>, vector<16x512xf32> -> vector<16x512xf32>
    %c0_162 = arith.constant 0 : index
    %c0_163 = arith.constant 0 : index
    %208 = vector.load %arg8[%c0_162, %c0_163] : memref<16x1xf32, #tpu.memory_space<vmem>>, vector<16x1xf32>
    %209 = vector.broadcast %208 : vector<16x1xf32> to vector<16x512xf32>
    %210 = arith.addf %207, %209 : vector<16x512xf32>
    %211 = arith.negf %210 : vector<16x512xf32>
    %212 = math.exp %211 : vector<16x512xf32>
    %cst_164 = arith.constant 1.000000e+00 : f32
    %213 = vector.broadcast %cst_164 : f32 to vector<16x512xf32>
    %214 = arith.addf %213, %212 : vector<16x512xf32>
    %215 = arith.divf %213, %214 : vector<16x512xf32>
    %216 = vector.extract_strided_slice %215 {offsets = [0, 0], sizes = [16, 256], strides = [1, 1]} : vector<16x512xf32> to vector<16x256xf32>
    %c0_165 = arith.constant 0 : index
    %c0_166 = arith.constant 0 : index
    %c0_167 = arith.constant 0 : index
    %217 = vector.load %arg9[%c0_165, %c0_166, %c0_167] : memref<2x16x256xf32, #tpu.memory_space<vmem>>, vector<1x16x256xf32>
    %218 = vector.shape_cast %217 : vector<1x16x256xf32> to vector<16x256xf32>
    %219 = vector.shape_cast %216 : vector<16x256xf32> to vector<1x16x256xf32>
    tpu.vector_store %arg9[%c0_165, %c0_166, %c0_167], %219 {strides = array<i32>} : memref<2x16x256xf32, #tpu.memory_space<vmem>>, vector<1x16x256xf32>,
    %220 = vector.extract_strided_slice %215 {offsets = [0, 256], sizes = [16, 256], strides = [1, 1]} : vector<16x512xf32> to vector<16x256xf32>
    %c1_168 = arith.constant 1 : index
    %c0_169 = arith.constant 0 : index
    %c0_170 = arith.constant 0 : index
    %221 = vector.load %arg9[%c1_168, %c0_169, %c0_170] : memref<2x16x256xf32, #tpu.memory_space<vmem>>, vector<1x16x256xf32>
    %222 = vector.shape_cast %221 : vector<1x16x256xf32> to vector<16x256xf32>
    %223 = vector.shape_cast %220 : vector<16x256xf32> to vector<1x16x256xf32>
    tpu.vector_store %arg9[%c1_168, %c0_169, %c0_170], %223 {strides = array<i32>} : memref<2x16x256xf32, #tpu.memory_space<vmem>>, vector<1x16x256xf32>,
    return
  }
  func.func @transform_0(%arg0: i32) -> (i32, i32) {
    %c0_i32 = arith.constant 0 : i32
    %c0_i32_0 = arith.constant 0 : i32
    %c0_i32_1 = arith.constant 0 : i32
    return %c0_i32, %c0_i32_0 : i32, i32
  }
  func.func @transform_1(%arg0: i32) -> (i32, i32, i32) {
    %c0_i32 = arith.constant 0 : i32
    %c0_i32_0 = arith.constant 0 : i32
    %c0_i32_1 = arith.constant 0 : i32
    return %arg0, %c0_i32, %c0_i32_0 : i32, i32, i32
  }
  func.func @transform_2(%arg0: i32) -> (i32, i32) {
    %c0_i32 = arith.constant 0 : i32
    %c0_i32_0 = arith.constant 0 : i32
    %c0_i32_1 = arith.constant 0 : i32
    return %c0_i32, %c0_i32_0 : i32, i32
  }
  func.func @transform_3(%arg0: i32) -> (i32, i32) {
    %c0_i32 = arith.constant 0 : i32
    %c0_i32_0 = arith.constant 0 : i32
    %c0_i32_1 = arith.constant 0 : i32
    return %c0_i32, %c0_i32_0 : i32, i32
  }
  func.func @transform_4(%arg0: i32) -> (i32, i32) {
    %c0_i32 = arith.constant 0 : i32
    %c0_i32_0 = arith.constant 0 : i32
    %c0_i32_1 = arith.constant 0 : i32
    return %c0_i32, %c0_i32_0 : i32, i32
  }
  func.func @transform_5(%arg0: i32) -> (i32, i32) {
    %c0_i32 = arith.constant 0 : i32
    %c0_i32_0 = arith.constant 0 : i32
    %c0_i32_1 = arith.constant 0 : i32
    return %c0_i32, %c0_i32_0 : i32, i32
  }
  func.func @transform_6(%arg0: i32) -> (i32, i32) {
    %c0_i32 = arith.constant 0 : i32
    %c0_i32_0 = arith.constant 0 : i32
    %c0_i32_1 = arith.constant 0 : i32
    return %c0_i32, %c0_i32_0 : i32, i32
  }
  func.func @transform_7(%arg0: i32) -> (i32, i32) {
    %c0_i32 = arith.constant 0 : i32
    %c0_i32_0 = arith.constant 0 : i32
    %c0_i32_1 = arith.constant 0 : i32
    return %c0_i32, %c0_i32_0 : i32, i32
  }
  func.func @transform_8(%arg0: i32) -> (i32, i32, i32) {
    %c0_i32 = arith.constant 0 : i32
    %c0_i32_0 = arith.constant 0 : i32
    %c0_i32_1 = arith.constant 0 : i32
    return %arg0, %c0_i32, %c0_i32_0 : i32, i32, i32
  }
}

</mosaic_0001>

<llo_original>
// kernel: tpu_custom_call.1
$region0: #{tpu_custom_call.1}
  #allocation0 [shape = 'u32[]', space=smem, size = 0x4, offset = 0x4, fixed_abs, tag = 'smem constant byte address 0x4 - core index']
  #allocation1 [shape = 'u32[144,128]{1,0:T(1,128)}', space=vmem, size = 0x12000, scoped, tag = 'internal scratch']
  #allocation2 [shape = 'f32[36,512]{1,0:T(8,128)}', space=vmem, size = 0x14000, scoped, tag = 'scratch operand']
  #allocation3 [shape = 'bf16[288,512]{1,0:T(16,128)(2,1)}', space=vmem, size = 0x48000, scoped, tag = 'scratch operand']
  %s0 = inlined_call_operand.vmem [shape: f32[9,256], index: 0, kind: input, shape index: {}]
  %s1 = inlined_call_operand.hbm [shape: f32[4,4,256], index: 1, kind: input, shape index: {}]
  %s2 = inlined_call_operand.hbm [shape: bf16[32,36], index: 2, kind: input, shape index: {}]
  %s3 = inlined_call_operand.vmem [shape: f32[32,1], index: 3, kind: input, shape index: {}]
  %s4 = inlined_call_operand.vmem [shape: bf16[32,288], index: 4, kind: input, shape index: {}]
  %s5 = inlined_call_operand.vmem [shape: f32[32,1], index: 5, kind: input, shape index: {}]
  %s6 = inlined_call_operand.vmem [shape: bf16[16,32], index: 6, kind: input, shape index: {}]
  %s7 = inlined_call_operand.vmem [shape: f32[16,1], index: 7, kind: input, shape index: {}]
  %s8 = inlined_call_operand.hbm [shape: f32[4,16,256], index: 8, kind: output, shape index: {}]
  %s9 = sld [smem:[#allocation0]]
  $region73: #{tpu_custom_call.1} parent=0
    _
  %s11 = ssub.s32 1, %s9
  %s12 = scalar_select 0, %s11, %s9
  $region1: #{tpu_custom_call.1} parent=0
    #allocation4 [shape = 'u8[16384]{0}', space=vmem, size = 0x4000, scoped, tag = 'input window, operand 1']
    #allocation5 [shape = 's32[2]{0}', space=sflag, size = 0x8, scoped, tag = 'scoped memory for tpu_custom_call.1']
    #allocation6 [shape = 's32[2]{0}', space=sflag, size = 0x8, scoped, tag = 'scoped memory for tpu_custom_call.1']
    #allocation7 [shape = 'u8[8192]{0}', space=vmem, size = 0x2000, scoped, tag = 'input window, operand 2, single buffered']
    #allocation8 [shape = 's32[1]{0}', space=sflag, size = 0x4, scoped, tag = 'scoped memory for tpu_custom_call.1']
    #allocation9 [shape = 'u8[65536]{0}', space=vmem, size = 0x10000, scoped, tag = 'output window, operand 0']
    %13 = vsyncpa [#allocation5], 0
    %s14 = scalar_lea.sflag [#allocation5], 1
    %15 = vsyncpa %s14, 0
    %16 = vsyncpa [#allocation8], 0
    %17 = vsyncpa [#allocation6], 0
    %s18 = scalar_lea.sflag [#allocation6], 1
    %19 = vsyncpa %s18, 0
    loop: start=0, step=1, limit=4
    $region2: #{tpu_custom_call.1} parent=1 // loop_pre_header
      _
    $region3: #{tpu_custom_call.1} parent=1 // loop_header
      %s21 = sphi 0, %s25
      %p22 = scmp.ge.s32.totalorder %s21, 4
      %s29 = sphi 0, %s29
      %s31 = sphi 0, %s29
      %s32 = sphi 0, %s31
      %s46 = sphi 0, %s32
      %s52 = sphi 0, %s54
      %s55 = sphi 0, %s52
      %s56 = sphi 0, %s55
      %s72 = sphi 0, %s56
      %s76 = sphi 0, %s76
      %s78 = sphi 0, %s76
      %s79 = sphi 0, %s78
      %s93 = sphi 0, %s79
      %s97 = sphi 0, %s97
      %s99 = sphi 0, %s97
      %s100 = sphi 0, %s99
      %s114 = sphi 0, %s100
      %s118 = sphi 0, %s118
      %s120 = sphi 0, %s118
      %s121 = sphi 0, %s120
      %s135 = sphi 0, %s121
      %s139 = sphi 0, %s139
      %s141 = sphi 0, %s139
      %s142 = sphi 0, %s141
      %s156 = sphi 0, %s142
      %s160 = sphi 0, %s160
      %s162 = sphi 0, %s160
      %s163 = sphi 0, %s162
      %s177 = sphi 0, %s163
      %s181 = sphi 0, %s181
      %s183 = sphi 0, %s181
      %s184 = sphi 0, %s183
      %s198 = sphi 0, %s184
      %s204 = sphi 0, %s206
      %s207 = sphi 0, %s204
      %s208 = sphi 0, %s207
      %s224 = sphi 0, %s208
    $region4: #{tpu_custom_call.1} parent=1 // loop_header_branch
      %24 = sbr.rel (%p22) target = $region8
    $region5: #{tpu_custom_call.1} parent=1 // loop_body
      %s26 = ssub.s32 %s21, 1
      %s27 = ssub.s32 %s21, 2
      %s28 = sadd.s32 %s21, 1
      %s30 = sadd.s32 %s29, 1
      %p33 = scmp.eq.s32.totalorder %s21, 1
      %p34 = scmp.ne.s32.totalorder %s29, %s31
      %p35 = scmp.eq.s32.totalorder %s21, 0
      %p36 = por %p34, %p35
      %p37 = scmp.ne.s32.totalorder %s29, %s31
      %p38 = scmp.eq.s32.totalorder %s26, 1
      %p39 = por %p37, %p38
      %p40 = scmp.ne.s32.totalorder %s31, %s32
      %p41 = scmp.eq.s32.totalorder %s26, 0
      %p42 = por %p40, %p41
      %p43 = scmp.ne.s32.totalorder %s31, %s32
      %p44 = scmp.eq.s32.totalorder %s27, 1
      %p45 = por %p43, %p44
      %p47 = scmp.ne.s32.totalorder %s32, %s46
      %p48 = scmp.eq.s32.totalorder %s27, 0
      %p49 = por %p47, %p48
      %s50 = ssub.s32 %s21, %s28
      %p51 = scmp.eq.s32.totalorder %s50, 0
      %s53 = sadd.s32 %s52, 1
      %s54 = scalar_select %p51, %s52, %s53
      %p57 = pneg %p51
      %p58 = scmp.eq.s32.totalorder %s21, 1
      %p59 = por %p57, %p58
      %p60 = scmp.ne.s32.totalorder %s52, %s55
      %p61 = scmp.eq.s32.totalorder %s21, 0
      %p62 = por %p60, %p61
      %p63 = scmp.ne.s32.totalorder %s52, %s55
      %p64 = scmp.eq.s32.totalorder %s26, 1
      %p65 = por %p63, %p64
      %p66 = scmp.ne.s32.totalorder %s55, %s56
      %p67 = scmp.eq.s32.totalorder %s26, 0
      %p68 = por %p66, %p67
      %p69 = scmp.ne.s32.totalorder %s55, %s56
      %p70 = scmp.eq.s32.totalorder %s27, 1
      %p71 = por %p69, %p70
      %p73 = scmp.ne.s32.totalorder %s56, %s72
      %p74 = scmp.eq.s32.totalorder %s27, 0
      %p75 = por %p73, %p74
      %s77 = sadd.s32 %s76, 1
      %p80 = scmp.eq.s32.totalorder %s21, 1
      %p81 = scmp.ne.s32.totalorder %s76, %s78
      %p82 = scmp.eq.s32.totalorder %s21, 0
      %p83 = por %p81, %p82
      %p84 = scmp.ne.s32.totalorder %s76, %s78
      %p85 = scmp.eq.s32.totalorder %s26, 1
      %p86 = por %p84, %p85
      %p87 = scmp.ne.s32.totalorder %s78, %s79
      %p88 = scmp.eq.s32.totalorder %s26, 0
      %p89 = por %p87, %p88
      %p90 = scmp.ne.s32.totalorder %s78, %s79
      %p91 = scmp.eq.s32.totalorder %s27, 1
      %p92 = por %p90, %p91
      %p94 = scmp.ne.s32.totalorder %s79, %s93
      %p95 = scmp.eq.s32.totalorder %s27, 0
      %p96 = por %p94, %p95
      %s98 = sadd.s32 %s97, 1
      %p101 = scmp.eq.s32.totalorder %s21, 1
      %p102 = scmp.ne.s32.totalorder %s97, %s99
      %p103 = scmp.eq.s32.totalorder %s21, 0
      %p104 = por %p102, %p103
      %p105 = scmp.ne.s32.totalorder %s97, %s99
      %p106 = scmp.eq.s32.totalorder %s26, 1
      %p107 = por %p105, %p106
      %p108 = scmp.ne.s32.totalorder %s99, %s100
      %p109 = scmp.eq.s32.totalorder %s26, 0
      %p110 = por %p108, %p109
      %p111 = scmp.ne.s32.totalorder %s99, %s100
      %p112 = scmp.eq.s32.totalorder %s27, 1
      %p113 = por %p111, %p112
      %p115 = scmp.ne.s32.totalorder %s100, %s114
      %p116 = scmp.eq.s32.totalorder %s27, 0
      %p117 = por %p115, %p116
      %s119 = sadd.s32 %s118, 1
      %p122 = scmp.eq.s32.totalorder %s21, 1
      %p123 = scmp.ne.s32.totalorder %s118, %s120
      %p124 = scmp.eq.s32.totalorder %s21, 0
      %p125 = por %p123, %p124
      %p126 = scmp.ne.s32.totalorder %s118, %s120
      %p127 = scmp.eq.s32.totalorder %s26, 1
      %p128 = por %p126, %p127
      %p129 = scmp.ne.s32.totalorder %s120, %s121
      %p130 = scmp.eq.s32.totalorder %s26, 0
      %p131 = por %p129, %p130
      %p132 = scmp.ne.s32.totalorder %s120, %s121
      %p133 = scmp.eq.s32.totalorder %s27, 1
      %p134 = por %p132, %p133
      %p136 = scmp.ne.s32.totalorder %s121, %s135
      %p137 = scmp.eq.s32.totalorder %s27, 0
      %p138 = por %p136, %p137
      %s140 = sadd.s32 %s139, 1
      %p143 = scmp.eq.s32.totalorder %s21, 1
      %p144 = scmp.ne.s32.totalorder %s139, %s141
      %p145 = scmp.eq.s32.totalorder %s21, 0
      %p146 = por %p144, %p145
      %p147 = scmp.ne.s32.totalorder %s139, %s141
      %p148 = scmp.eq.s32.totalorder %s26, 1
      %p149 = por %p147, %p148
      %p150 = scmp.ne.s32.totalorder %s141, %s142
      %p151 = scmp.eq.s32.totalorder %s26, 0
      %p152 = por %p150, %p151
      %p153 = scmp.ne.s32.totalorder %s141, %s142
      %p154 = scmp.eq.s32.totalorder %s27, 1
      %p155 = por %p153, %p154
      %p157 = scmp.ne.s32.totalorder %s142, %s156
      %p158 = scmp.eq.s32.totalorder %s27, 0
      %p159 = por %p157, %p158
      %s161 = sadd.s32 %s160, 1
      %p164 = scmp.eq.s32.totalorder %s21, 1
      %p165 = scmp.ne.s32.totalorder %s160, %s162
      %p166 = scmp.eq.s32.totalorder %s21, 0
      %p167 = por %p165, %p166
      %p168 = scmp.ne.s32.totalorder %s160, %s162
      %p169 = scmp.eq.s32.totalorder %s26, 1
      %p170 = por %p168, %p169
      %p171 = scmp.ne.s32.totalorder %s162, %s163
      %p172 = scmp.eq.s32.totalorder %s26, 0
      %p173 = por %p171, %p172
      %p174 = scmp.ne.s32.totalorder %s162, %s163
      %p175 = scmp.eq.s32.totalorder %s27, 1
      %p176 = por %p174, %p175
      %p178 = scmp.ne.s32.totalorder %s163, %s177
      %p179 = scmp.eq.s32.totalorder %s27, 0
      %p180 = por %p178, %p179
      %s182 = sadd.s32 %s181, 1
      %p185 = scmp.eq.s32.totalorder %s21, 1
      %p186 = scmp.ne.s32.totalorder %s181, %s183
      %p187 = scmp.eq.s32.totalorder %s21, 0
      %p188 = por %p186, %p187
      %p189 = scmp.ne.s32.totalorder %s181, %s183
      %p190 = scmp.eq.s32.totalorder %s26, 1
      %p191 = por %p189, %p190
      %p192 = scmp.ne.s32.totalorder %s183, %s184
      %p193 = scmp.eq.s32.totalorder %s26, 0
      %p194 = por %p192, %p193
      %p195 = scmp.ne.s32.totalorder %s183, %s184
      %p196 = scmp.eq.s32.totalorder %s27, 1
      %p197 = por %p195, %p196
      %p199 = scmp.ne.s32.totalorder %s184, %s198
      %p200 = scmp.eq.s32.totalorder %s27, 0
      %p201 = por %p199, %p200
      %s202 = ssub.s32 %s21, %s28
      %p203 = scmp.eq.s32.totalorder %s202, 0
      %s205 = sadd.s32 %s204, 1
      %s206 = scalar_select %p203, %s204, %s205
      %p209 = pneg %p203
      %p210 = scmp.eq.s32.totalorder %s21, 1
      %p211 = por %p209, %p210
      %p212 = scmp.ne.s32.totalorder %s204, %s207
      %p213 = scmp.eq.s32.totalorder %s21, 0
      %p214 = por %p212, %p213
      %p215 = scmp.ne.s32.totalorder %s204, %s207
      %p216 = scmp.eq.s32.totalorder %s26, 1
      %p217 = por %p215, %p216
      %p218 = scmp.ne.s32.totalorder %s207, %s208
      %p219 = scmp.eq.s32.totalorder %s26, 0
      %p220 = por %p218, %p219
      %p221 = scmp.ne.s32.totalorder %s207, %s208
      %p222 = scmp.eq.s32.totalorder %s27, 1
      %p223 = por %p221, %p222
      %p225 = scmp.ne.s32.totalorder %s208, %s224
      %p226 = scmp.eq.s32.totalorder %s27, 0
      %p227 = por %p225, %p226
      %p228 = scmp.le.s32.totalorder 1, %s21
      %p229 = scmp.lt.s32.totalorder %s21, 3
      %p230 = pnand %p228, %p229
      %p231 = pneg %p230
      // Predicated region
      $region9: #{tpu_custom_call.1} parent=5 // pred_check
        _
      $region10: #{tpu_custom_call.1} parent=5 // pred_check_branch
        %233 = sbr.rel (%p230) target = $region12
      $region11: #{tpu_custom_call.1} parent=5 // pred_region
        %s234 = ssub.s32 %s21, 1
        // Predicated region
        $region13: #{tpu_custom_call.1} parent=11 // pred_check
          %p235 = pneg %p42
        $region14: #{tpu_custom_call.1} parent=11 // pred_check_branch
          %237 = sbr.rel (%p235) target = $region16
        $region15: #{tpu_custom_call.1} parent=11 // pred_region
          _
        $region16: #{tpu_custom_call.1} parent=11 // pred_fallthru
          _
        // Predicated region
        $region17: #{tpu_custom_call.1} parent=11 // pred_check
          %p238 = pneg %p89
        $region18: #{tpu_custom_call.1} parent=11 // pred_check_branch
          %240 = sbr.rel (%p238) target = $region20
        $region19: #{tpu_custom_call.1} parent=11 // pred_region
          %s242 = ssub.s32 256, 256
          %243 = vsyncadd [#allocation8], %s242
          %s244 = sshll.u32 [#allocation7], 4
          %s245 = int_to_ptr.vmem [resolvable:$true] %s244
          %250 = dma.hbm_to_vmem [thread:$0]  %s2, 256, %s245, [#allocation8], 64, 64, 4
        $region20: #{tpu_custom_call.1} parent=11 // pred_fallthru
          _
        // Predicated region
        $region21: #{tpu_custom_call.1} parent=11 // pred_check
          %p251 = pneg %p110
        $region22: #{tpu_custom_call.1} parent=11 // pred_check_branch
          %253 = sbr.rel (%p251) target = $region24
        $region23: #{tpu_custom_call.1} parent=11 // pred_region
          _
        $region24: #{tpu_custom_call.1} parent=11 // pred_fallthru
          _
        // Predicated region
        $region25: #{tpu_custom_call.1} parent=11 // pred_check
          %p254 = pneg %p131
        $region26: #{tpu_custom_call.1} parent=11 // pred_check_branch
          %256 = sbr.rel (%p254) target = $region28
        $region27: #{tpu_custom_call.1} parent=11 // pred_region
          _
        $region28: #{tpu_custom_call.1} parent=11 // pred_fallthru
          _
        // Predicated region
        $region29: #{tpu_custom_call.1} parent=11 // pred_check
          %p257 = pneg %p152
        $region30: #{tpu_custom_call.1} parent=11 // pred_check_branch
          %259 = sbr.rel (%p257) target = $region32
        $region31: #{tpu_custom_call.1} parent=11 // pred_region
          _
        $region32: #{tpu_custom_call.1} parent=11 // pred_fallthru
          _
        // Predicated region
        $region33: #{tpu_custom_call.1} parent=11 // pred_check
          %p260 = pneg %p173
        $region34: #{tpu_custom_call.1} parent=11 // pred_check_branch
          %262 = sbr.rel (%p260) target = $region36
        $region35: #{tpu_custom_call.1} parent=11 // pred_region
          _
        $region36: #{tpu_custom_call.1} parent=11 // pred_fallthru
          _
        // Predicated region
        $region37: #{tpu_custom_call.1} parent=11 // pred_check
          %p263 = pneg %p194
        $region38: #{tpu_custom_call.1} parent=11 // pred_check_branch
          %265 = sbr.rel (%p263) target = $region40
        $region39: #{tpu_custom_call.1} parent=11 // pred_region
          _
        $region40: #{tpu_custom_call.1} parent=11 // pred_fallthru
          _
      $region12: #{tpu_custom_call.1} parent=5 // pred_fallthru
        _
      %p266 = scmp.lt.s32.totalorder %s21, 2
      // Predicated region
      $region41: #{tpu_custom_call.1} parent=5 // pred_check
        %p267 = pneg %p266
      $region42: #{tpu_custom_call.1} parent=5 // pred_check_branch
        %269 = sbr.rel (%p267) target = $region44
      $region43: #{tpu_custom_call.1} parent=5 // pred_region
        // Predicated region
        $region45: #{tpu_custom_call.1} parent=43 // pred_check
          %p270 = pneg %p62
        $region46: #{tpu_custom_call.1} parent=43 // pred_check_branch
          %272 = sbr.rel (%p270) target = $region48
        $region47: #{tpu_custom_call.1} parent=43 // pred_region
          %s273 = sand.u32 %s52, 1
          %s274 = scalar_lea.sflag [#allocation5], %s273
          %s275 = sand.u32 %s52, 1
          %s276 = smul.addr %s275, 16
          %s277 = scalar_lea.vmem [#allocation4], %s276
          %s278 = smul.u32 2, %s21
          %s280 = ssub.s32 256, 256
          %281 = vsyncadd %s274, %s280
          %s282 = smul.addr %s278, 2
          %s283 = smul.addr %s282, 64
          %s284 = scalar_lea.hbm %s1, %s283
          %s285 = sshll.u32 %s277, 4
          %s286 = int_to_ptr.vmem [resolvable:$true] %s285
          %291 = dma.hbm_to_vmem [thread:$0]  %s284, 256, %s286, %s274, 128, 128, 8
        $region48: #{tpu_custom_call.1} parent=43 // pred_fallthru
          _
      $region44: #{tpu_custom_call.1} parent=5 // pred_fallthru
        _
      %p292 = scmp.le.s32.totalorder 1, %s21
      %p293 = scmp.lt.s32.totalorder %s21, 3
      %p294 = pnand %p292, %p293
      %p295 = pneg %p294
      // Predicated region
      $region49: #{tpu_custom_call.1} parent=5 // pred_check
        _
      $region50: #{tpu_custom_call.1} parent=5 // pred_check_branch
        %297 = sbr.rel (%p294) target = $region52
      $region51: #{tpu_custom_call.1} parent=5 // pred_region
        %s298 = ssub.s32 %s21, 1
        %s299 = sand.u32 %s55, 1
        %s300 = scalar_lea.sflag [#allocation5], %s299
        %s301 = sand.u32 %s55, 1
        %s302 = smul.addr %s301, 16
        %s303 = scalar_lea.vmem [#allocation4], %s302
        // Predicated region
        $region53: #{tpu_custom_call.1} parent=51 // pred_check
          %p304 = pneg %p68
        $region54: #{tpu_custom_call.1} parent=51 // pred_check_branch
          %306 = sbr.rel (%p304) target = $region56
        $region55: #{tpu_custom_call.1} parent=51 // pred_region
          %307 = dma.done %s300, 256
        $region56: #{tpu_custom_call.1} parent=51 // pred_fallthru
          _
        // Predicated region
        $region57: #{tpu_custom_call.1} parent=51 // pred_check
          %p308 = pneg %p89
        $region58: #{tpu_custom_call.1} parent=51 // pred_check_branch
          %310 = sbr.rel (%p308) target = $region60
        $region59: #{tpu_custom_call.1} parent=51 // pred_region
          %311 = dma.done [#allocation8], 256
        $region60: #{tpu_custom_call.1} parent=51 // pred_fallthru
          _
        %p312 = pneg %p42
        %p313 = pneg %p39
        %s314 = sand.u32 %s55, 1
        %s315 = scalar_lea.sflag [#allocation5], %s314
        %s316 = sand.u32 %s55, 1
        %s317 = smul.addr %s316, 16
        %s318 = scalar_lea.vmem [#allocation4], %s317
        %p319 = pneg %p68
        %p320 = pneg %p65
        %p321 = pneg %p89
        %p322 = pneg %p86
        %p323 = pneg %p110
        %p324 = pneg %p107
        %p325 = pneg %p131
        %p326 = pneg %p128
        %p327 = pneg %p152
        %p328 = pneg %p149
        %p329 = pneg %p173
        %p330 = pneg %p170
        %p331 = pneg %p194
        %p332 = pneg %p191
        %p333 = pneg %p220
        %p334 = pneg %p217
        %s335 = sand.u32 %s207, 1
        %s336 = scalar_lea.sflag [#allocation6], %s335
        %s337 = sand.u32 %s207, 1
        %s338 = smul.addr %s337, 64
        %s339 = scalar_lea.vmem [#allocation9], %s338
        %s340 = smul.u32 2, %s26
        %s341 = smul.u32 2, %s26
        %v343 = vld [vmem:[%s303] sm:$0xff]
        %v345 = vcombine.high %v343, %v343
        %347 = vrot.lane.b32.xlu0 %v343, 17
        %v348 = vpop.permute.xlu0 %347
        %349 = vrot.lane.b32.xlu0 %v345, 17
        %v350 = vpop.permute.xlu0 %349
        %v351 = vlaneseq
        %v352 = vand.u32 %v351, 127
        %vm353 = vcmp.lt.s32.totalorder %v352, 17
        %v354 = vsel %vm353, %v348, %v350
        %v355 = vsel %vm353, %v350, %v348
        %v356 = vld [vmem:[%s0] ss:$8 sm:$0x3]
        %v358 = vlaneseq
        %v359 = vshrl.u32 %v358, 7
        %v360 = vsub.s32 0, %v359
        %v361 = vrot.slane %v356, %v360
        %v362 = vlaneseq
        %v363 = vshrl.u32 %v362, 7
        %v364 = vsub.s32 1, %v363
        %v365 = vrot.slane %v356, %v364
        %v368 = vmul.f32 %v355, %v361
        %v369 = vmul.f32 %v354, %v365
        %370 = vst [vmem:[#allocation2] sm:$0xf] %v368
        %371 = vst [vmem:[#allocation2 + $0x8] sm:$0xf] %v369
        %372 = vrot.lane.b32.xlu0 %v343, 16
        %v373 = vpop.permute.xlu0 %372
        %374 = vrot.lane.b32.xlu0 %v345, 16
        %v375 = vpop.permute.xlu0 %374
        %vm376 = vcmp.lt.s32.totalorder %v352, 16
        %v377 = vsel %vm376, %v373, %v375
        %v378 = vsel %vm376, %v375, %v373
        %s379 = scalar_lea.vmem %s0, 1
        %v380 = vld [vmem:[%s379] ss:$8 sm:$0x3]
        %v382 = vlaneseq
        %v383 = vshrl.u32 %v382, 7
        %v384 = vsub.s32 0, %v383
        %v385 = vrot.slane %v380, %v384
        %v386 = vlaneseq
        %v387 = vshrl.u32 %v386, 7
        %v388 = vsub.s32 1, %v387
        %v389 = vrot.slane %v380, %v388
        %v392 = vmul.f32 %v378, %v385
        %v393 = vmul.f32 %v377, %v389
        %v396 = vrot.slane %v392, 4
        %v397 = vrot.slane %v393, 4
        %400 = vst [vmem:[#allocation2] sm:$0xf0] %v396
        %401 = vst [vmem:[#allocation2 + $0x8] sm:$0xf0] %v397
        %402 = vrot.lane.b32.xlu0 %v343, 15
        %v403 = vpop.permute.xlu0 %402
        %404 = vrot.lane.b32.xlu0 %v345, 15
        %v405 = vpop.permute.xlu0 %404
        %vm406 = vcmp.lt.s32.totalorder %v352, 15
        %v407 = vsel %vm406, %v403, %v405
        %v408 = vsel %vm406, %v405, %v403
        %s409 = scalar_lea.vmem %s0, 2
        %v410 = vld [vmem:[%s409] ss:$8 sm:$0x3]
        %v412 = vlaneseq
        %v413 = vshrl.u32 %v412, 7
        %v414 = vsub.s32 0, %v413
        %v415 = vrot.slane %v410, %v414
        %v416 = vlaneseq
        %v417 = vshrl.u32 %v416, 7
        %v418 = vsub.s32 1, %v417
        %v419 = vrot.slane %v410, %v418
        %v422 = vmul.f32 %v408, %v415
        %v423 = vmul.f32 %v407, %v419
        %424 = vst [vmem:[#allocation2 + $0x20] sm:$0xf] %v422
        %425 = vst [vmem:[#allocation2 + $0x28] sm:$0xf] %v423
        %426 = vrot.lane.b32.xlu0 %v343, 1
        %v427 = vpop.permute.xlu0 %426
        %428 = vrot.lane.b32.xlu0 %v345, 1
        %v429 = vpop.permute.xlu0 %428
        %vm430 = vcmp.lt.s32.totalorder %v352, 1
        %v431 = vsel %vm430, %v427, %v429
        %v432 = vsel %vm430, %v429, %v427
        %s433 = scalar_lea.vmem %s0, 3
        %v434 = vld [vmem:[%s433] ss:$8 sm:$0x3]
        %v436 = vlaneseq
        %v437 = vshrl.u32 %v436, 7
        %v438 = vsub.s32 0, %v437
        %v439 = vrot.slane %v434, %v438
        %v440 = vlaneseq
        %v441 = vshrl.u32 %v440, 7
        %v442 = vsub.s32 1, %v441
        %v443 = vrot.slane %v434, %v442
        %v446 = vmul.f32 %v432, %v439
        %v447 = vmul.f32 %v431, %v443
        %v450 = vrot.slane %v446, 4
        %v451 = vrot.slane %v447, 4
        %454 = vst [vmem:[#allocation2 + $0x20] sm:$0xf0] %v450
        %455 = vst [vmem:[#allocation2 + $0x28] sm:$0xf0] %v451
        %456 = vst [vmem:[#allocation2 + $0x40] sm:$0xf] %v343
        %457 = vst [vmem:[#allocation2 + $0x48] sm:$0xf] %v345
        %458 = vrot.lane.b32.xlu0 %v343, 127
        %v459 = vpop.permute.xlu0 %458
        %460 = vrot.lane.b32.xlu0 %v345, 127
        %v461 = vpop.permute.xlu0 %460
        %vm462 = vcmp.lt.s32.totalorder %v352, 127
        %v463 = vsel %vm462, %v459, %v461
        %v464 = vsel %vm462, %v461, %v459
        %s465 = scalar_lea.vmem %s0, 5
        %v466 = vld [vmem:[%s465] ss:$8 sm:$0x3]
        %v468 = vlaneseq
        %v469 = vshrl.u32 %v468, 7
        %v470 = vsub.s32 0, %v469
        %v471 = vrot.slane %v466, %v470
        %v472 = vlaneseq
        %v473 = vshrl.u32 %v472, 7
        %v474 = vsub.s32 1, %v473
        %v475 = vrot.slane %v466, %v474
        %v478 = vmul.f32 %v463, %v471
        %v479 = vmul.f32 %v464, %v475
        %v482 = vrot.slane %v478, 4
        %v483 = vrot.slane %v479, 4
        %486 = vst [vmem:[#allocation2 + $0x40] sm:$0xf0] %v482
        %487 = vst [vmem:[#allocation2 + $0x48] sm:$0xf0] %v483
        %488 = vrot.lane.b32.xlu0 %v343, 113
        %v489 = vpop.permute.xlu0 %488
        %490 = vrot.lane.b32.xlu0 %v345, 113
        %v491 = vpop.permute.xlu0 %490
        %vm492 = vcmp.lt.s32.totalorder %v352, 113
        %v493 = vsel %vm492, %v489, %v491
        %v494 = vsel %vm492, %v491, %v489
        %s495 = scalar_lea.vmem %s0, 6
        %v496 = vld [vmem:[%s495] ss:$8 sm:$0x3]
        %v498 = vlaneseq
        %v499 = vshrl.u32 %v498, 7
        %v500 = vsub.s32 0, %v499
        %v501 = vrot.slane %v496, %v500
        %v502 = vlaneseq
        %v503 = vshrl.u32 %v502, 7
        %v504 = vsub.s32 1, %v503
        %v505 = vrot.slane %v496, %v504
        %v508 = vmul.f32 %v493, %v501
        %v509 = vmul.f32 %v494, %v505
        %510 = vst [vmem:[#allocation2 + $0x60] sm:$0xf] %v508
        %511 = vst [vmem:[#allocation2 + $0x68] sm:$0xf] %v509
        %512 = vrot.lane.b32.xlu0 %v343, 112
        %v513 = vpop.permute.xlu0 %512
        %514 = vrot.lane.b32.xlu0 %v345, 112
        %v515 = vpop.permute.xlu0 %514
        %vm516 = vcmp.lt.s32.totalorder %v352, 112
        %v517 = vsel %vm516, %v513, %v515
        %v518 = vsel %vm516, %v515, %v513
        %s519 = scalar_lea.vmem %s0, 7
        %v520 = vld [vmem:[%s519] ss:$8 sm:$0x3]
        %v522 = vlaneseq
        %v523 = vshrl.u32 %v522, 7
        %v524 = vsub.s32 0, %v523
        %v525 = vrot.slane %v520, %v524
        %v526 = vlaneseq
        %v527 = vshrl.u32 %v526, 7
        %v528 = vsub.s32 1, %v527
        %v529 = vrot.slane %v520, %v528
        %v532 = vmul.f32 %v517, %v525
        %v533 = vmul.f32 %v518, %v529
        %v536 = vrot.slane %v532, 4
        %v537 = vrot.slane %v533, 4
        %540 = vst [vmem:[#allocation2 + $0x60] sm:$0xf0] %v536
        %541 = vst [vmem:[#allocation2 + $0x68] sm:$0xf0] %v537
        %542 = vrot.lane.b32.xlu0 %v343, 111
        %v543 = vpop.permute.xlu0 %542
        %544 = vrot.lane.b32.xlu0 %v345, 111
        %v545 = vpop.permute.xlu0 %544
        %vm546 = vcmp.lt.s32.totalorder %v352, 111
        %v547 = vsel %vm546, %v543, %v545
        %v548 = vsel %vm546, %v545, %v543
        %s549 = scalar_lea.vmem %s0, 16
        %v550 = vld [vmem:[%s549] ss:$8 sm:$0x3]
        %v552 = vlaneseq
        %v553 = vshrl.u32 %v552, 7
        %v554 = vsub.s32 0, %v553
        %v555 = vrot.slane %v550, %v554
        %v556 = vlaneseq
        %v557 = vshrl.u32 %v556, 7
        %v558 = vsub.s32 1, %v557
        %v559 = vrot.slane %v550, %v558
        %v562 = vmul.f32 %v547, %v555
        %v563 = vmul.f32 %v548, %v559
        %564 = vst [vmem:[#allocation2 + $0x80] sm:$0xf] %v562
        %565 = vst [vmem:[#allocation2 + $0x88] sm:$0xf] %v563
        %s566 = scalar_lea.vmem %s303, 8 [#allocation4]
        %v567 = vld [vmem:[%s566] sm:$0xff]
        %v569 = vcombine.high %v567, %v567
        %571 = vrot.lane.b32.xlu0 %v567, 17
        %v572 = vpop.permute.xlu0 %571
        %573 = vrot.lane.b32.xlu0 %v569, 17
        %v574 = vpop.permute.xlu0 %573
        %v575 = vsel %vm353, %v572, %v574
        %v576 = vsel %vm353, %v574, %v572
        %v577 = vld [vmem:[%s0] ss:$8 sm:$0x3]
        %v579 = vlaneseq
        %v580 = vshrl.u32 %v579, 7
        %v581 = vsub.s32 0, %v580
        %v582 = vrot.slane %v577, %v581
        %v583 = vlaneseq
        %v584 = vshrl.u32 %v583, 7
        %v585 = vsub.s32 1, %v584
        %v586 = vrot.slane %v577, %v585
        %v589 = vmul.f32 %v576, %v582
        %v590 = vmul.f32 %v575, %v586
        %591 = vst [vmem:[#allocation2 + $0x10] sm:$0xf] %v589
        %592 = vst [vmem:[#allocation2 + $0x18] sm:$0xf] %v590
        %593 = vrot.lane.b32.xlu0 %v567, 16
        %v594 = vpop.permute.xlu0 %593
        %595 = vrot.lane.b32.xlu0 %v569, 16
        %v596 = vpop.permute.xlu0 %595
        %v597 = vsel %vm376, %v594, %v596
        %v598 = vsel %vm376, %v596, %v594
        %v599 = vld [vmem:[%s379] ss:$8 sm:$0x3]
        %v601 = vlaneseq
        %v602 = vshrl.u32 %v601, 7
        %v603 = vsub.s32 0, %v602
        %v604 = vrot.slane %v599, %v603
        %v605 = vlaneseq
        %v606 = vshrl.u32 %v605, 7
        %v607 = vsub.s32 1, %v606
        %v608 = vrot.slane %v599, %v607
        %v611 = vmul.f32 %v598, %v604
        %v612 = vmul.f32 %v597, %v608
        %v615 = vrot.slane %v611, 4
        %v616 = vrot.slane %v612, 4
        %619 = vst [vmem:[#allocation2 + $0x10] sm:$0xf0] %v615
        %620 = vst [vmem:[#allocation2 + $0x18] sm:$0xf0] %v616
        %621 = vrot.lane.b32.xlu0 %v567, 15
        %v622 = vpop.permute.xlu0 %621
        %623 = vrot.lane.b32.xlu0 %v569, 15
        %v624 = vpop.permute.xlu0 %623
        %v625 = vsel %vm406, %v622, %v624
        %v626 = vsel %vm406, %v624, %v622
        %v627 = vld [vmem:[%s409] ss:$8 sm:$0x3]
        %v629 = vlaneseq
        %v630 = vshrl.u32 %v629, 7
        %v631 = vsub.s32 0, %v630
        %v632 = vrot.slane %v627, %v631
        %v633 = vlaneseq
        %v634 = vshrl.u32 %v633, 7
        %v635 = vsub.s32 1, %v634
        %v636 = vrot.slane %v627, %v635
        %v639 = vmul.f32 %v626, %v632
        %v640 = vmul.f32 %v625, %v636
        %641 = vst [vmem:[#allocation2 + $0x30] sm:$0xf] %v639
        %642 = vst [vmem:[#allocation2 + $0x38] sm:$0xf] %v640
        %643 = vrot.lane.b32.xlu0 %v567, 1
        %v644 = vpop.permute.xlu0 %643
        %645 = vrot.lane.b32.xlu0 %v569, 1
        %v646 = vpop.permute.xlu0 %645
        %v647 = vsel %vm430, %v644, %v646
        %v648 = vsel %vm430, %v646, %v644
        %v649 = vld [vmem:[%s433] ss:$8 sm:$0x3]
        %v651 = vlaneseq
        %v652 = vshrl.u32 %v651, 7
        %v653 = vsub.s32 0, %v652
        %v654 = vrot.slane %v649, %v653
        %v655 = vlaneseq
        %v656 = vshrl.u32 %v655, 7
        %v657 = vsub.s32 1, %v656
        %v658 = vrot.slane %v649, %v657
        %v661 = vmul.f32 %v648, %v654
        %v662 = vmul.f32 %v647, %v658
        %v665 = vrot.slane %v661, 4
        %v666 = vrot.slane %v662, 4
        %669 = vst [vmem:[#allocation2 + $0x30] sm:$0xf0] %v665
        %670 = vst [vmem:[#allocation2 + $0x38] sm:$0xf0] %v666
        %671 = vst [vmem:[#allocation2 + $0x50] sm:$0xf] %v567
        %672 = vst [vmem:[#allocation2 + $0x58] sm:$0xf] %v569
        %673 = vrot.lane.b32.xlu0 %v567, 127
        %v674 = vpop.permute.xlu0 %673
        %675 = vrot.lane.b32.xlu0 %v569, 127
        %v676 = vpop.permute.xlu0 %675
        %v677 = vsel %vm462, %v674, %v676
        %v678 = vsel %vm462, %v676, %v674
        %v679 = vld [vmem:[%s465] ss:$8 sm:$0x3]
        %v681 = vlaneseq
        %v682 = vshrl.u32 %v681, 7
        %v683 = vsub.s32 0, %v682
        %v684 = vrot.slane %v679, %v683
        %v685 = vlaneseq
        %v686 = vshrl.u32 %v685, 7
        %v687 = vsub.s32 1, %v686
        %v688 = vrot.slane %v679, %v687
        %v691 = vmul.f32 %v677, %v684
        %v692 = vmul.f32 %v678, %v688
        %v695 = vrot.slane %v691, 4
        %v696 = vrot.slane %v692, 4
        %699 = vst [vmem:[#allocation2 + $0x50] sm:$0xf0] %v695
        %700 = vst [vmem:[#allocation2 + $0x58] sm:$0xf0] %v696
        %701 = vrot.lane.b32.xlu0 %v567, 113
        %v702 = vpop.permute.xlu0 %701
        %703 = vrot.lane.b32.xlu0 %v569, 113
        %v704 = vpop.permute.xlu0 %703
        %v705 = vsel %vm492, %v702, %v704
        %v706 = vsel %vm492, %v704, %v702
        %v707 = vld [vmem:[%s495] ss:$8 sm:$0x3]
        %v709 = vlaneseq
        %v710 = vshrl.u32 %v709, 7
        %v711 = vsub.s32 0, %v710
        %v712 = vrot.slane %v707, %v711
        %v713 = vlaneseq
        %v714 = vshrl.u32 %v713, 7
        %v715 = vsub.s32 1, %v714
        %v716 = vrot.slane %v707, %v715
        %v719 = vmul.f32 %v705, %v712
        %v720 = vmul.f32 %v706, %v716
        %721 = vst [vmem:[#allocation2 + $0x70] sm:$0xf] %v719
        %722 = vst [vmem:[#allocation2 + $0x78] sm:$0xf] %v720
        %723 = vrot.lane.b32.xlu0 %v567, 112
        %v724 = vpop.permute.xlu0 %723
        %725 = vrot.lane.b32.xlu0 %v569, 112
        %v726 = vpop.permute.xlu0 %725
        %v727 = vsel %vm516, %v724, %v726
        %v728 = vsel %vm516, %v726, %v724
        %v729 = vld [vmem:[%s519] ss:$8 sm:$0x3]
        %v731 = vlaneseq
        %v732 = vshrl.u32 %v731, 7
        %v733 = vsub.s32 0, %v732
        %v734 = vrot.slane %v729, %v733
        %v735 = vlaneseq
        %v736 = vshrl.u32 %v735, 7
        %v737 = vsub.s32 1, %v736
        %v738 = vrot.slane %v729, %v737
        %v741 = vmul.f32 %v727, %v734
        %v742 = vmul.f32 %v728, %v738
        %v745 = vrot.slane %v741, 4
        %v746 = vrot.slane %v742, 4
        %749 = vst [vmem:[#allocation2 + $0x70] sm:$0xf0] %v745
        %750 = vst [vmem:[#allocation2 + $0x78] sm:$0xf0] %v746
        %751 = vrot.lane.b32.xlu0 %v567, 111
        %v752 = vpop.permute.xlu0 %751
        %753 = vrot.lane.b32.xlu0 %v569, 111
        %v754 = vpop.permute.xlu0 %753
        %v755 = vsel %vm546, %v752, %v754
        %v756 = vsel %vm546, %v754, %v752
        %v757 = vld [vmem:[%s549] ss:$8 sm:$0x3]
        %v759 = vlaneseq
        %v760 = vshrl.u32 %v759, 7
        %v761 = vsub.s32 0, %v760
        %v762 = vrot.slane %v757, %v761
        %v763 = vlaneseq
        %v764 = vshrl.u32 %v763, 7
        %v765 = vsub.s32 1, %v764
        %v766 = vrot.slane %v757, %v765
        %v769 = vmul.f32 %v755, %v762
        %v770 = vmul.f32 %v756, %v766
        %771 = vst [vmem:[#allocation2 + $0x90] sm:$0xf] %v769
        %772 = vst [vmem:[#allocation2 + $0x98] sm:$0xf] %v770
        %v773 = vld [vmem:[#allocation7] sm:$0xf]
        %v774 = vld [vmem:[#allocation7 + $0x4] sm:$0xf]
        %v775 = vld [vmem:[#allocation7 + $0x8] sm:$0xf]
        %v776 = vld [vmem:[#allocation7 + $0xc] sm:$0xf]
        %v777 = vld [vmem:[#allocation2] sm:$0xff]
        %v778 = vld [vmem:[#allocation2 + $0x8] sm:$0xff]
        %v779 = vld [vmem:[#allocation2 + $0x10] sm:$0xff]
        %v780 = vld [vmem:[#allocation2 + $0x18] sm:$0xff]
        %v781 = vld [vmem:[#allocation2 + $0x20] sm:$0xff]
        %v782 = vld [vmem:[#allocation2 + $0x28] sm:$0xff]
        %v783 = vld [vmem:[#allocation2 + $0x30] sm:$0xff]
        %v784 = vld [vmem:[#allocation2 + $0x38] sm:$0xff]
        %v785 = vld [vmem:[#allocation2 + $0x40] sm:$0xff]
        %v786 = vld [vmem:[#allocation2 + $0x48] sm:$0xff]
        %v787 = vld [vmem:[#allocation2 + $0x50] sm:$0xff]
        %v788 = vld [vmem:[#allocation2 + $0x58] sm:$0xff]
        %v789 = vld [vmem:[#allocation2 + $0x60] sm:$0xff]
        %v790 = vld [vmem:[#allocation2 + $0x68] sm:$0xff]
        %v791 = vld [vmem:[#allocation2 + $0x70] sm:$0xff]
        %v792 = vld [vmem:[#allocation2 + $0x78] sm:$0xff]
        %v793 = vld [vmem:[#allocation2 + $0x80] sm:$0xf]
        %v794 = vld [vmem:[#allocation2 + $0x88] sm:$0xf]
        %v795 = vld [vmem:[#allocation2 + $0x90] sm:$0xf]
        %v796 = vld [vmem:[#allocation2 + $0x98] sm:$0xf]
        %v797 = vpack.c.bf16 %v781, %v777
        %v798 = vpack.c.bf16 %v782, %v778
        %v799 = vpack.c.bf16 %v783, %v779
        %v800 = vpack.c.bf16 %v784, %v780
        %v801 = vpack.c.bf16 %v789, %v785
        %v802 = vpack.c.bf16 %v790, %v786
        %v803 = vpack.c.bf16 %v791, %v787
        %v804 = vpack.c.bf16 %v792, %v788
        %v805 = vpack.c.bf16 %v793, %v793
        %v806 = vpack.c.bf16 %v794, %v794
        %v807 = vpack.c.bf16 %v795, %v795
        %v808 = vpack.c.bf16 %v796, %v796
        %v809 = vld [vmem:[%s3] sm:$0xff]
        %v810 = vld [vmem:[%s3 + $0x8] sm:$0xff]
        %v811 = vld [vmem:[%s3 + $0x10] sm:$0xff]
        %v812 = vld [vmem:[%s3 + $0x18] sm:$0xff]
        %814 = vset.pattern.permute.xlu0 0
        %815 = vperm.xlu0 %814, %v809
        %v816 = vpop.permute.xlu0 %815
        %819 = vset.pattern.permute.xlu0 0
        %820 = vperm.xlu0 %819, %v810
        %v821 = vpop.permute.xlu0 %820
        %824 = vset.pattern.permute.xlu0 0
        %825 = vperm.xlu0 %824, %v811
        %v826 = vpop.permute.xlu0 %825
        %829 = vset.pattern.permute.xlu0 0
        %830 = vperm.xlu0 %829, %v812
        %v831 = vpop.permute.xlu0 %830
        %v837 = vunpack.c.l.b16 %v773
        %v838 = vunpack.c.l.b16 %v774
        %v839 = vunpack.c.l.b16 %v775
        %v840 = vunpack.c.l.b16 %v776
        %v841 = vpack.c.b16 %v838, %v837
        %v842 = vpack.c.b16 %v840, %v839
        %vm843 = vcmask 293888
        %v845 = vsel %vm843, %v841, 0
        %v848 = vsel %vm843, %v842, 0
        %vm850 = vcmask 1041408
        %v852 = vsel %vm850, %v805, 0
        %v855 = vsel %vm850, %v806, 0
        %v858 = vsel %vm850, %v807, 0
        %v861 = vsel %vm850, %v808, 0
        %863 = vmatprep.subr.bf16.mxu0 %v798
        %864 = vmatpush1.bf16.msra.mxu0 %v797
        %865 = vmatprep.subr.bf16.mxu0 %v802
        %866 = vmatpush1.bf16.msra.mxu0 %v801
        %867 = vmatprep.subr.bf16.mxu0 %v855
        %868 = vmatpush1.bf16.msra.mxu0 %v852
        %869 = vmatprep.subr.bf16.mxu0 0
        %870 = vmatpush1.bf16.msra.mxu0 0
        %871 = vmatprep.subr.bf16.mxu0 0
        %872 = vmatpush1.bf16.msra.mxu0 0
        %873 = vmatprep.subr.bf16.mxu0 0
        %874 = vmatpush1.bf16.msra.mxu0 0
        %875 = vmatprep.subr.bf16.mxu0 0
        %876 = vmatpush1.bf16.msra.mxu0 0
        %877 = vmatprep.subr.bf16.mxu0 0
        %878 = vmatpush1.bf16.msra.mxu0 0
        %879 = vmatprep.subr.bf16.mxu0 0
        %880 = vmatpush1.bf16.msra.mxu0 0
        %881 = vmatprep.subr.bf16.mxu0 0
        %882 = vmatpush1.bf16.msra.mxu0 0
        %883 = vmatprep.subr.bf16.mxu0 0
        %884 = vmatpush1.bf16.msra.mxu0 0
        %885 = vmatprep.subr.bf16.mxu0 0
        %886 = vmatpush1.bf16.msra.mxu0 0
        %887 = vmatprep.subr.bf16.mxu0 0
        %888 = vmatpush1.bf16.msra.mxu0 0
        %889 = vmatprep.subr.bf16.mxu0 0
        %890 = vmatpush1.bf16.msra.mxu0 0
        %891 = vmatprep.subr.bf16.mxu0 0
        %892 = vmatpush1.bf16.msra.mxu0 0
        %893 = vmatprep.subr.bf16.mxu0 0
        %894 = vmatpush1.bf16.msra.mxu0 0
        %895 = vmatprep.mubr.bf16.mxu0 0
        %896 = vmatmul.mubr.bf16.gmra.mrb[0].mxu0 %v845
        %v897 = vpop.f32.mrb[0].mxu0
        %v898 = vadd.f32 %v816, %v897
        %v899 = vpop.f32.mrb[0].mxu0
        %v900 = vadd.f32 %v816, %v899
        %v901 = vpop.f32.mrb[0].mxu0
        %v902 = vadd.f32 %v821, %v901
        %v903 = vpop.f32.mrb[0].mxu0
        %v904 = vadd.f32 %v821, %v903
        %905 = vmatprep.mubr.bf16.mxu0 0
        %906 = vmatmul.mubr.bf16.gmra.mrb[0].mxu0 %v848
        %v907 = vpop.f32.mrb[0].mxu0
        %v908 = vadd.f32 %v826, %v907
        %v909 = vpop.f32.mrb[0].mxu0
        %v910 = vadd.f32 %v826, %v909
        %v911 = vpop.f32.mrb[0].mxu0
        %v912 = vadd.f32 %v831, %v911
        %v913 = vpop.f32.mrb[0].mxu0
        %v914 = vadd.f32 %v831, %v913
        %915 = vdwg.mxu0
        %916 = vmatprep.subr.bf16.mxu0 %v800
        %917 = vmatpush1.bf16.msra.mxu0 %v799
        %918 = vmatprep.subr.bf16.mxu0 %v804
        %919 = vmatpush1.bf16.msra.mxu0 %v803
        %920 = vmatprep.subr.bf16.mxu0 %v861
        %921 = vmatpush1.bf16.msra.mxu0 %v858
        %922 = vmatprep.subr.bf16.mxu0 0
        %923 = vmatpush1.bf16.msra.mxu0 0
        %924 = vmatprep.subr.bf16.mxu0 0
        %925 = vmatpush1.bf16.msra.mxu0 0
        %926 = vmatprep.subr.bf16.mxu0 0
        %927 = vmatpush1.bf16.msra.mxu0 0
        %928 = vmatprep.subr.bf16.mxu0 0
        %929 = vmatpush1.bf16.msra.mxu0 0
        %930 = vmatprep.subr.bf16.mxu0 0
        %931 = vmatpush1.bf16.msra.mxu0 0
        %932 = vmatprep.subr.bf16.mxu0 0
        %933 = vmatpush1.bf16.msra.mxu0 0
        %934 = vmatprep.subr.bf16.mxu0 0
        %935 = vmatpush1.bf16.msra.mxu0 0
        %936 = vmatprep.subr.bf16.mxu0 0
        %937 = vmatpush1.bf16.msra.mxu0 0
        %938 = vmatprep.subr.bf16.mxu0 0
        %939 = vmatpush1.bf16.msra.mxu0 0
        %940 = vmatprep.subr.bf16.mxu0 0
        %941 = vmatpush1.bf16.msra.mxu0 0
        %942 = vmatprep.subr.bf16.mxu0 0
        %943 = vmatpush1.bf16.msra.mxu0 0
        %944 = vmatprep.subr.bf16.mxu0 0
        %945 = vmatpush1.bf16.msra.mxu0 0
        %946 = vmatprep.subr.bf16.mxu0 0
        %947 = vmatpush1.bf16.msra.mxu0 0
        %948 = vmatprep.mubr.bf16.mxu0 0
        %949 = vmatmul.mubr.bf16.gmra.mrb[0].mxu0 %v845
        %v950 = vpop.f32.mrb[0].mxu0
        %v951 = vadd.f32 %v816, %v950
        %v952 = vpop.f32.mrb[0].mxu0
        %v953 = vadd.f32 %v816, %v952
        %v954 = vpop.f32.mrb[0].mxu0
        %v955 = vadd.f32 %v821, %v954
        %v956 = vpop.f32.mrb[0].mxu0
        %v957 = vadd.f32 %v821, %v956
        %958 = vmatprep.mubr.bf16.mxu0 0
        %959 = vmatmul.mubr.bf16.gmra.mrb[0].mxu0 %v848
        %v960 = vpop.f32.mrb[0].mxu0
        %v961 = vadd.f32 %v826, %v960
        %v962 = vpop.f32.mrb[0].mxu0
        %v963 = vadd.f32 %v826, %v962
        %v964 = vpop.f32.mrb[0].mxu0
        %v965 = vadd.f32 %v831, %v964
        %v966 = vpop.f32.mrb[0].mxu0
        %v967 = vadd.f32 %v831, %v966
        %968 = vdwg.mxu0
        %v969 = vmax.f32 %v898, 0.0
        %v970 = vmax.f32 %v900, 0.0
        %v971 = vmax.f32 %v951, 0.0
        %v972 = vmax.f32 %v953, 0.0
        %v973 = vmax.f32 %v902, 0.0
        %v974 = vmax.f32 %v904, 0.0
        %v975 = vmax.f32 %v955, 0.0
        %v976 = vmax.f32 %v957, 0.0
        %v977 = vmax.f32 %v908, 0.0
        %v978 = vmax.f32 %v910, 0.0
        %v979 = vmax.f32 %v961, 0.0
        %v980 = vmax.f32 %v963, 0.0
        %v981 = vmax.f32 %v912, 0.0
        %v982 = vmax.f32 %v914, 0.0
        %v983 = vmax.f32 %v965, 0.0
        %v984 = vmax.f32 %v967, 0.0
        %985 = vrot.lane.b32.xlu0 %v969, 17
        %v986 = vpop.permute.xlu0 %985
        %987 = vrot.lane.b32.xlu0 %v973, 17
        %v988 = vpop.permute.xlu0 %987
        %989 = vrot.lane.b32.xlu0 %v977, 17
        %v990 = vpop.permute.xlu0 %989
        %991 = vrot.lane.b32.xlu0 %v981, 17
        %v992 = vpop.permute.xlu0 %991
        %993 = vrot.lane.b32.xlu0 %v970, 17
        %v994 = vpop.permute.xlu0 %993
        %995 = vrot.lane.b32.xlu0 %v974, 17
        %v996 = vpop.permute.xlu0 %995
        %997 = vrot.lane.b32.xlu0 %v978, 17
        %v998 = vpop.permute.xlu0 %997
        %999 = vrot.lane.b32.xlu0 %v982, 17
        %v1000 = vpop.permute.xlu0 %999
        %v1001 = vsel %vm353, %v986, %v994
        %v1002 = vsel %vm353, %v988, %v996
        %v1003 = vsel %vm353, %v990, %v998
        %v1004 = vsel %vm353, %v992, %v1000
        %v1005 = vsel %vm353, %v994, %v986
        %v1006 = vsel %vm353, %v996, %v988
        %v1007 = vsel %vm353, %v998, %v990
        %v1008 = vsel %vm353, %v1000, %v992
        %v1009 = vld [vmem:[%s0] ss:$8 sm:$0x3]
        %v1011 = vlaneseq
        %v1012 = vshrl.u32 %v1011, 7
        %v1013 = vsub.s32 0, %v1012
        %v1014 = vrot.slane %v1009, %v1013
        %v1015 = vlaneseq
        %v1016 = vshrl.u32 %v1015, 7
        %v1017 = vsub.s32 1, %v1016
        %v1018 = vrot.slane %v1009, %v1017
        %v1021 = vmul.f32 %v1005, %v1014
        %v1022 = vmul.f32 %v1001, %v1018
        %v1023 = vmul.f32 %v1006, %v1014
        %v1024 = vmul.f32 %v1002, %v1018
        %v1025 = vmul.f32 %v1007, %v1014
        %v1026 = vmul.f32 %v1003, %v1018
        %v1027 = vmul.f32 %v1008, %v1014
        %v1028 = vmul.f32 %v1004, %v1018
        %v1029 = vpack.c.bf16 %v1023, %v1021
        %v1030 = vpack.c.bf16 %v1024, %v1022
        %v1031 = vpack.c.bf16 %v1027, %v1025
        %v1032 = vpack.c.bf16 %v1028, %v1026
        %1033 = vst [vmem:[#allocation3] sm:$0xff] %v1029
        %1034 = vst [vmem:[#allocation3 + $0x8] sm:$0xff] %v1030
        %1035 = vst [vmem:[#allocation3 + $0x20] sm:$0xff] %v1031
        %1036 = vst [vmem:[#allocation3 + $0x28] sm:$0xff] %v1032
        %1037 = vrot.lane.b32.xlu0 %v969, 16
        %v1038 = vpop.permute.xlu0 %1037
        %1039 = vrot.lane.b32.xlu0 %v973, 16
        %v1040 = vpop.permute.xlu0 %1039
        %1041 = vrot.lane.b32.xlu0 %v977, 16
        %v1042 = vpop.permute.xlu0 %1041
        %1043 = vrot.lane.b32.xlu0 %v981, 16
        %v1044 = vpop.permute.xlu0 %1043
        %1045 = vrot.lane.b32.xlu0 %v970, 16
        %v1046 = vpop.permute.xlu0 %1045
        %1047 = vrot.lane.b32.xlu0 %v974, 16
        %v1048 = vpop.permute.xlu0 %1047
        %1049 = vrot.lane.b32.xlu0 %v978, 16
        %v1050 = vpop.permute.xlu0 %1049
        %1051 = vrot.lane.b32.xlu0 %v982, 16
        %v1052 = vpop.permute.xlu0 %1051
        %v1053 = vsel %vm376, %v1038, %v1046
        %v1054 = vsel %vm376, %v1040, %v1048
        %v1055 = vsel %vm376, %v1042, %v1050
        %v1056 = vsel %vm376, %v1044, %v1052
        %v1057 = vsel %vm376, %v1046, %v1038
        %v1058 = vsel %vm376, %v1048, %v1040
        %v1059 = vsel %vm376, %v1050, %v1042
        %v1060 = vsel %vm376, %v1052, %v1044
        %v1061 = vld [vmem:[%s379] ss:$8 sm:$0x3]
        %v1063 = vlaneseq
        %v1064 = vshrl.u32 %v1063, 7
        %v1065 = vsub.s32 0, %v1064
        %v1066 = vrot.slane %v1061, %v1065
        %v1067 = vlaneseq
        %v1068 = vshrl.u32 %v1067, 7
        %v1069 = vsub.s32 1, %v1068
        %v1070 = vrot.slane %v1061, %v1069
        %v1073 = vmul.f32 %v1057, %v1066
        %v1074 = vmul.f32 %v1053, %v1070
        %v1075 = vmul.f32 %v1058, %v1066
        %v1076 = vmul.f32 %v1054, %v1070
        %v1077 = vmul.f32 %v1059, %v1066
        %v1078 = vmul.f32 %v1055, %v1070
        %v1079 = vmul.f32 %v1060, %v1066
        %v1080 = vmul.f32 %v1056, %v1070
        %v1081 = vpack.c.bf16 %v1075, %v1073
        %v1082 = vpack.c.bf16 %v1076, %v1074
        %v1083 = vpack.c.bf16 %v1079, %v1077
        %v1084 = vpack.c.bf16 %v1080, %v1078
        %1085 = vst [vmem:[#allocation3 + $0x40] sm:$0xff] %v1081
        %1086 = vst [vmem:[#allocation3 + $0x48] sm:$0xff] %v1082
        %1087 = vst [vmem:[#allocation3 + $0x60] sm:$0xff] %v1083
        %1088 = vst [vmem:[#allocation3 + $0x68] sm:$0xff] %v1084
        %1089 = vrot.lane.b32.xlu0 %v969, 15
        %v1090 = vpop.permute.xlu0 %1089
        %1091 = vrot.lane.b32.xlu0 %v973, 15
        %v1092 = vpop.permute.xlu0 %1091
        %1093 = vrot.lane.b32.xlu0 %v977, 15
        %v1094 = vpop.permute.xlu0 %1093
        %1095 = vrot.lane.b32.xlu0 %v981, 15
        %v1096 = vpop.permute.xlu0 %1095
        %1097 = vrot.lane.b32.xlu0 %v970, 15
        %v1098 = vpop.permute.xlu0 %1097
        %1099 = vrot.lane.b32.xlu0 %v974, 15
        %v1100 = vpop.permute.xlu0 %1099
        %1101 = vrot.lane.b32.xlu0 %v978, 15
        %v1102 = vpop.permute.xlu0 %1101
        %1103 = vrot.lane.b32.xlu0 %v982, 15
        %v1104 = vpop.permute.xlu0 %1103
        %v1105 = vsel %vm406, %v1090, %v1098
        %v1106 = vsel %vm406, %v1092, %v1100
        %v1107 = vsel %vm406, %v1094, %v1102
        %v1108 = vsel %vm406, %v1096, %v1104
        %v1109 = vsel %vm406, %v1098, %v1090
        %v1110 = vsel %vm406, %v1100, %v1092
        %v1111 = vsel %vm406, %v1102, %v1094
        %v1112 = vsel %vm406, %v1104, %v1096
        %v1113 = vld [vmem:[%s409] ss:$8 sm:$0x3]
        %v1115 = vlaneseq
        %v1116 = vshrl.u32 %v1115, 7
        %v1117 = vsub.s32 0, %v1116
        %v1118 = vrot.slane %v1113, %v1117
        %v1119 = vlaneseq
        %v1120 = vshrl.u32 %v1119, 7
        %v1121 = vsub.s32 1, %v1120
        %v1122 = vrot.slane %v1113, %v1121
        %v1125 = vmul.f32 %v1109, %v1118
        %v1126 = vmul.f32 %v1105, %v1122
        %v1127 = vmul.f32 %v1110, %v1118
        %v1128 = vmul.f32 %v1106, %v1122
        %v1129 = vmul.f32 %v1111, %v1118
        %v1130 = vmul.f32 %v1107, %v1122
        %v1131 = vmul.f32 %v1112, %v1118
        %v1132 = vmul.f32 %v1108, %v1122
        %v1133 = vpack.c.bf16 %v1127, %v1125
        %v1134 = vpack.c.bf16 %v1128, %v1126
        %v1135 = vpack.c.bf16 %v1131, %v1129
        %v1136 = vpack.c.bf16 %v1132, %v1130
        %1137 = vst [vmem:[#allocation3 + $0x80] sm:$0xff] %v1133
        %1138 = vst [vmem:[#allocation3 + $0x88] sm:$0xff] %v1134
        %1139 = vst [vmem:[#allocation3 + $0xa0] sm:$0xff] %v1135
        %1140 = vst [vmem:[#allocation3 + $0xa8] sm:$0xff] %v1136
        %1141 = vrot.lane.b32.xlu0 %v969, 1
        %v1142 = vpop.permute.xlu0 %1141
        %1143 = vrot.lane.b32.xlu0 %v973, 1
        %v1144 = vpop.permute.xlu0 %1143
        %1145 = vrot.lane.b32.xlu0 %v977, 1
        %v1146 = vpop.permute.xlu0 %1145
        %1147 = vrot.lane.b32.xlu0 %v981, 1
        %v1148 = vpop.permute.xlu0 %1147
        %1149 = vrot.lane.b32.xlu0 %v970, 1
        %v1150 = vpop.permute.xlu0 %1149
        %1151 = vrot.lane.b32.xlu0 %v974, 1
        %v1152 = vpop.permute.xlu0 %1151
        %1153 = vrot.lane.b32.xlu0 %v978, 1
        %v1154 = vpop.permute.xlu0 %1153
        %1155 = vrot.lane.b32.xlu0 %v982, 1
        %v1156 = vpop.permute.xlu0 %1155
        %v1157 = vsel %vm430, %v1142, %v1150
        %v1158 = vsel %vm430, %v1144, %v1152
        %v1159 = vsel %vm430, %v1146, %v1154
        %v1160 = vsel %vm430, %v1148, %v1156
        %v1161 = vsel %vm430, %v1150, %v1142
        %v1162 = vsel %vm430, %v1152, %v1144
        %v1163 = vsel %vm430, %v1154, %v1146
        %v1164 = vsel %vm430, %v1156, %v1148
        %v1165 = vld [vmem:[%s433] ss:$8 sm:$0x3]
        %v1167 = vlaneseq
        %v1168 = vshrl.u32 %v1167, 7
        %v1169 = vsub.s32 0, %v1168
        %v1170 = vrot.slane %v1165, %v1169
        %v1171 = vlaneseq
        %v1172 = vshrl.u32 %v1171, 7
        %v1173 = vsub.s32 1, %v1172
        %v1174 = vrot.slane %v1165, %v1173
        %v1177 = vmul.f32 %v1161, %v1170
        %v1178 = vmul.f32 %v1157, %v1174
        %v1179 = vmul.f32 %v1162, %v1170
        %v1180 = vmul.f32 %v1158, %v1174
        %v1181 = vmul.f32 %v1163, %v1170
        %v1182 = vmul.f32 %v1159, %v1174
        %v1183 = vmul.f32 %v1164, %v1170
        %v1184 = vmul.f32 %v1160, %v1174
        %v1185 = vpack.c.bf16 %v1179, %v1177
        %v1186 = vpack.c.bf16 %v1180, %v1178
        %v1187 = vpack.c.bf16 %v1183, %v1181
        %v1188 = vpack.c.bf16 %v1184, %v1182
        %1189 = vst [vmem:[#allocation3 + $0xc0] sm:$0xff] %v1185
        %1190 = vst [vmem:[#allocation3 + $0xc8] sm:$0xff] %v1186
        %1191 = vst [vmem:[#allocation3 + $0xe0] sm:$0xff] %v1187
        %1192 = vst [vmem:[#allocation3 + $0xe8] sm:$0xff] %v1188
        %v1193 = vpack.c.bf16 %v973, %v969
        %v1194 = vpack.c.bf16 %v974, %v970
        %v1195 = vpack.c.bf16 %v981, %v977
        %v1196 = vpack.c.bf16 %v982, %v978
        %1197 = vst [vmem:[#allocation3 + $0x100] sm:$0xff] %v1193
        %1198 = vst [vmem:[#allocation3 + $0x108] sm:$0xff] %v1194
        %1199 = vst [vmem:[#allocation3 + $0x120] sm:$0xff] %v1195
        %1200 = vst [vmem:[#allocation3 + $0x128] sm:$0xff] %v1196
        %1201 = vrot.lane.b32.xlu0 %v969, 127
        %v1202 = vpop.permute.xlu0 %1201
        %1203 = vrot.lane.b32.xlu0 %v973, 127
        %v1204 = vpop.permute.xlu0 %1203
        %1205 = vrot.lane.b32.xlu0 %v977, 127
        %v1206 = vpop.permute.xlu0 %1205
        %1207 = vrot.lane.b32.xlu0 %v981, 127
        %v1208 = vpop.permute.xlu0 %1207
        %1209 = vrot.lane.b32.xlu0 %v970, 127
        %v1210 = vpop.permute.xlu0 %1209
        %1211 = vrot.lane.b32.xlu0 %v974, 127
        %v1212 = vpop.permute.xlu0 %1211
        %1213 = vrot.lane.b32.xlu0 %v978, 127
        %v1214 = vpop.permute.xlu0 %1213
        %1215 = vrot.lane.b32.xlu0 %v982, 127
        %v1216 = vpop.permute.xlu0 %1215
        %v1217 = vsel %vm462, %v1202, %v1210
        %v1218 = vsel %vm462, %v1204, %v1212
        %v1219 = vsel %vm462, %v1206, %v1214
        %v1220 = vsel %vm462, %v1208, %v1216
        %v1221 = vsel %vm462, %v1210, %v1202
        %v1222 = vsel %vm462, %v1212, %v1204
        %v1223 = vsel %vm462, %v1214, %v1206
        %v1224 = vsel %vm462, %v1216, %v1208
        %v1225 = vld [vmem:[%s465] ss:$8 sm:$0x3]
        %v1227 = vlaneseq
        %v1228 = vshrl.u32 %v1227, 7
        %v1229 = vsub.s32 0, %v1228
        %v1230 = vrot.slane %v1225, %v1229
        %v1231 = vlaneseq
        %v1232 = vshrl.u32 %v1231, 7
        %v1233 = vsub.s32 1, %v1232
        %v1234 = vrot.slane %v1225, %v1233
        %v1237 = vmul.f32 %v1217, %v1230
        %v1238 = vmul.f32 %v1221, %v1234
        %v1239 = vmul.f32 %v1218, %v1230
        %v1240 = vmul.f32 %v1222, %v1234
        %v1241 = vmul.f32 %v1219, %v1230
        %v1242 = vmul.f32 %v1223, %v1234
        %v1243 = vmul.f32 %v1220, %v1230
        %v1244 = vmul.f32 %v1224, %v1234
        %v1245 = vpack.c.bf16 %v1239, %v1237
        %v1246 = vpack.c.bf16 %v1240, %v1238
        %v1247 = vpack.c.bf16 %v1243, %v1241
        %v1248 = vpack.c.bf16 %v1244, %v1242
        %1249 = vst [vmem:[#allocation3 + $0x140] sm:$0xff] %v1245
        %1250 = vst [vmem:[#allocation3 + $0x148] sm:$0xff] %v1246
        %1251 = vst [vmem:[#allocation3 + $0x160] sm:$0xff] %v1247
        %1252 = vst [vmem:[#allocation3 + $0x168] sm:$0xff] %v1248
        %1253 = vrot.lane.b32.xlu0 %v969, 113
        %v1254 = vpop.permute.xlu0 %1253
        %1255 = vrot.lane.b32.xlu0 %v973, 113
        %v1256 = vpop.permute.xlu0 %1255
        %1257 = vrot.lane.b32.xlu0 %v977, 113
        %v1258 = vpop.permute.xlu0 %1257
        %1259 = vrot.lane.b32.xlu0 %v981, 113
        %v1260 = vpop.permute.xlu0 %1259
        %1261 = vrot.lane.b32.xlu0 %v970, 113
        %v1262 = vpop.permute.xlu0 %1261
        %1263 = vrot.lane.b32.xlu0 %v974, 113
        %v1264 = vpop.permute.xlu0 %1263
        %1265 = vrot.lane.b32.xlu0 %v978, 113
        %v1266 = vpop.permute.xlu0 %1265
        %1267 = vrot.lane.b32.xlu0 %v982, 113
        %v1268 = vpop.permute.xlu0 %1267
        %v1269 = vsel %vm492, %v1254, %v1262
        %v1270 = vsel %vm492, %v1256, %v1264
        %v1271 = vsel %vm492, %v1258, %v1266
        %v1272 = vsel %vm492, %v1260, %v1268
        %v1273 = vsel %vm492, %v1262, %v1254
        %v1274 = vsel %vm492, %v1264, %v1256
        %v1275 = vsel %vm492, %v1266, %v1258
        %v1276 = vsel %vm492, %v1268, %v1260
        %v1277 = vld [vmem:[%s495] ss:$8 sm:$0x3]
        %v1279 = vlaneseq
        %v1280 = vshrl.u32 %v1279, 7
        %v1281 = vsub.s32 0, %v1280
        %v1282 = vrot.slane %v1277, %v1281
        %v1283 = vlaneseq
        %v1284 = vshrl.u32 %v1283, 7
        %v1285 = vsub.s32 1, %v1284
        %v1286 = vrot.slane %v1277, %v1285
        %v1289 = vmul.f32 %v1269, %v1282
        %v1290 = vmul.f32 %v1273, %v1286
        %v1291 = vmul.f32 %v1270, %v1282
        %v1292 = vmul.f32 %v1274, %v1286
        %v1293 = vmul.f32 %v1271, %v1282
        %v1294 = vmul.f32 %v1275, %v1286
        %v1295 = vmul.f32 %v1272, %v1282
        %v1296 = vmul.f32 %v1276, %v1286
        %v1297 = vpack.c.bf16 %v1291, %v1289
        %v1298 = vpack.c.bf16 %v1292, %v1290
        %v1299 = vpack.c.bf16 %v1295, %v1293
        %v1300 = vpack.c.bf16 %v1296, %v1294
        %1301 = vst [vmem:[#allocation3 + $0x180] sm:$0xff] %v1297
        %1302 = vst [vmem:[#allocation3 + $0x188] sm:$0xff] %v1298
        %1303 = vst [vmem:[#allocation3 + $0x1a0] sm:$0xff] %v1299
        %1304 = vst [vmem:[#allocation3 + $0x1a8] sm:$0xff] %v1300
        %1305 = vrot.lane.b32.xlu0 %v969, 112
        %v1306 = vpop.permute.xlu0 %1305
        %1307 = vrot.lane.b32.xlu0 %v973, 112
        %v1308 = vpop.permute.xlu0 %1307
        %1309 = vrot.lane.b32.xlu0 %v977, 112
        %v1310 = vpop.permute.xlu0 %1309
        %1311 = vrot.lane.b32.xlu0 %v981, 112
        %v1312 = vpop.permute.xlu0 %1311
        %1313 = vrot.lane.b32.xlu0 %v970, 112
        %v1314 = vpop.permute.xlu0 %1313
        %1315 = vrot.lane.b32.xlu0 %v974, 112
        %v1316 = vpop.permute.xlu0 %1315
        %1317 = vrot.lane.b32.xlu0 %v978, 112
        %v1318 = vpop.permute.xlu0 %1317
        %1319 = vrot.lane.b32.xlu0 %v982, 112
        %v1320 = vpop.permute.xlu0 %1319
        %v1321 = vsel %vm516, %v1306, %v1314
        %v1322 = vsel %vm516, %v1308, %v1316
        %v1323 = vsel %vm516, %v1310, %v1318
        %v1324 = vsel %vm516, %v1312, %v1320
        %v1325 = vsel %vm516, %v1314, %v1306
        %v1326 = vsel %vm516, %v1316, %v1308
        %v1327 = vsel %vm516, %v1318, %v1310
        %v1328 = vsel %vm516, %v1320, %v1312
        %v1329 = vld [vmem:[%s519] ss:$8 sm:$0x3]
        %v1331 = vlaneseq
        %v1332 = vshrl.u32 %v1331, 7
        %v1333 = vsub.s32 0, %v1332
        %v1334 = vrot.slane %v1329, %v1333
        %v1335 = vlaneseq
        %v1336 = vshrl.u32 %v1335, 7
        %v1337 = vsub.s32 1, %v1336
        %v1338 = vrot.slane %v1329, %v1337
        %v1341 = vmul.f32 %v1321, %v1334
        %v1342 = vmul.f32 %v1325, %v1338
        %v1343 = vmul.f32 %v1322, %v1334
        %v1344 = vmul.f32 %v1326, %v1338
        %v1345 = vmul.f32 %v1323, %v1334
        %v1346 = vmul.f32 %v1327, %v1338
        %v1347 = vmul.f32 %v1324, %v1334
        %v1348 = vmul.f32 %v1328, %v1338
        %v1349 = vpack.c.bf16 %v1343, %v1341
        %v1350 = vpack.c.bf16 %v1344, %v1342
        %v1351 = vpack.c.bf16 %v1347, %v1345
        %v1352 = vpack.c.bf16 %v1348, %v1346
        %1353 = vst [vmem:[#allocation3 + $0x1c0] sm:$0xff] %v1349
        %1354 = vst [vmem:[#allocation3 + $0x1c8] sm:$0xff] %v1350
        %1355 = vst [vmem:[#allocation3 + $0x1e0] sm:$0xff] %v1351
        %1356 = vst [vmem:[#allocation3 + $0x1e8] sm:$0xff] %v1352
        %1357 = vrot.lane.b32.xlu0 %v969, 111
        %v1358 = vpop.permute.xlu0 %1357
        %1359 = vrot.lane.b32.xlu0 %v973, 111
        %v1360 = vpop.permute.xlu0 %1359
        %1361 = vrot.lane.b32.xlu0 %v977, 111
        %v1362 = vpop.permute.xlu0 %1361
        %1363 = vrot.lane.b32.xlu0 %v981, 111
        %v1364 = vpop.permute.xlu0 %1363
        %1365 = vrot.lane.b32.xlu0 %v970, 111
        %v1366 = vpop.permute.xlu0 %1365
        %1367 = vrot.lane.b32.xlu0 %v974, 111
        %v1368 = vpop.permute.xlu0 %1367
        %1369 = vrot.lane.b32.xlu0 %v978, 111
        %v1370 = vpop.permute.xlu0 %1369
        %1371 = vrot.lane.b32.xlu0 %v982, 111
        %v1372 = vpop.permute.xlu0 %1371
        %v1373 = vsel %vm546, %v1358, %v1366
        %v1374 = vsel %vm546, %v1360, %v1368
        %v1375 = vsel %vm546, %v1362, %v1370
        %v1376 = vsel %vm546, %v1364, %v1372
        %v1377 = vsel %vm546, %v1366, %v1358
        %v1378 = vsel %vm546, %v1368, %v1360
        %v1379 = vsel %vm546, %v1370, %v1362
        %v1380 = vsel %vm546, %v1372, %v1364
        %v1381 = vld [vmem:[%s549] ss:$8 sm:$0x3]
        %v1383 = vlaneseq
        %v1384 = vshrl.u32 %v1383, 7
        %v1385 = vsub.s32 0, %v1384
        %v1386 = vrot.slane %v1381, %v1385
        %v1387 = vlaneseq
        %v1388 = vshrl.u32 %v1387, 7
        %v1389 = vsub.s32 1, %v1388
        %v1390 = vrot.slane %v1381, %v1389
        %v1393 = vmul.f32 %v1373, %v1386
        %v1394 = vmul.f32 %v1377, %v1390
        %v1395 = vmul.f32 %v1374, %v1386
        %v1396 = vmul.f32 %v1378, %v1390
        %v1397 = vmul.f32 %v1375, %v1386
        %v1398 = vmul.f32 %v1379, %v1390
        %v1399 = vmul.f32 %v1376, %v1386
        %v1400 = vmul.f32 %v1380, %v1390
        %v1401 = vpack.c.bf16 %v1395, %v1393
        %v1402 = vpack.c.bf16 %v1396, %v1394
        %v1403 = vpack.c.bf16 %v1399, %v1397
        %v1404 = vpack.c.bf16 %v1400, %v1398
        %1405 = vst [vmem:[#allocation3 + $0x200] sm:$0xff] %v1401
        %1406 = vst [vmem:[#allocation3 + $0x208] sm:$0xff] %v1402
        %1407 = vst [vmem:[#allocation3 + $0x220] sm:$0xff] %v1403
        %1408 = vst [vmem:[#allocation3 + $0x228] sm:$0xff] %v1404
        %1409 = vrot.lane.b32.xlu0 %v971, 17
        %v1410 = vpop.permute.xlu0 %1409
        %1411 = vrot.lane.b32.xlu0 %v975, 17
        %v1412 = vpop.permute.xlu0 %1411
        %1413 = vrot.lane.b32.xlu0 %v979, 17
        %v1414 = vpop.permute.xlu0 %1413
        %1415 = vrot.lane.b32.xlu0 %v983, 17
        %v1416 = vpop.permute.xlu0 %1415
        %1417 = vrot.lane.b32.xlu0 %v972, 17
        %v1418 = vpop.permute.xlu0 %1417
        %1419 = vrot.lane.b32.xlu0 %v976, 17
        %v1420 = vpop.permute.xlu0 %1419
        %1421 = vrot.lane.b32.xlu0 %v980, 17
        %v1422 = vpop.permute.xlu0 %1421
        %1423 = vrot.lane.b32.xlu0 %v984, 17
        %v1424 = vpop.permute.xlu0 %1423
        %v1425 = vsel %vm353, %v1410, %v1418
        %v1426 = vsel %vm353, %v1412, %v1420
        %v1427 = vsel %vm353, %v1414, %v1422
        %v1428 = vsel %vm353, %v1416, %v1424
        %v1429 = vsel %vm353, %v1418, %v1410
        %v1430 = vsel %vm353, %v1420, %v1412
        %v1431 = vsel %vm353, %v1422, %v1414
        %v1432 = vsel %vm353, %v1424, %v1416
        %v1433 = vld [vmem:[%s0] ss:$8 sm:$0x3]
        %v1435 = vlaneseq
        %v1436 = vshrl.u32 %v1435, 7
        %v1437 = vsub.s32 0, %v1436
        %v1438 = vrot.slane %v1433, %v1437
        %v1439 = vlaneseq
        %v1440 = vshrl.u32 %v1439, 7
        %v1441 = vsub.s32 1, %v1440
        %v1442 = vrot.slane %v1433, %v1441
        %v1445 = vmul.f32 %v1429, %v1438
        %v1446 = vmul.f32 %v1425, %v1442
        %v1447 = vmul.f32 %v1430, %v1438
        %v1448 = vmul.f32 %v1426, %v1442
        %v1449 = vmul.f32 %v1431, %v1438
        %v1450 = vmul.f32 %v1427, %v1442
        %v1451 = vmul.f32 %v1432, %v1438
        %v1452 = vmul.f32 %v1428, %v1442
        %v1453 = vpack.c.bf16 %v1447, %v1445
        %v1454 = vpack.c.bf16 %v1448, %v1446
        %v1455 = vpack.c.bf16 %v1451, %v1449
        %v1456 = vpack.c.bf16 %v1452, %v1450
        %1457 = vst [vmem:[#allocation3 + $0x10] sm:$0xff] %v1453
        %1458 = vst [vmem:[#allocation3 + $0x18] sm:$0xff] %v1454
        %1459 = vst [vmem:[#allocation3 + $0x30] sm:$0xff] %v1455
        %1460 = vst [vmem:[#allocation3 + $0x38] sm:$0xff] %v1456
        %1461 = vrot.lane.b32.xlu0 %v971, 16
        %v1462 = vpop.permute.xlu0 %1461
        %1463 = vrot.lane.b32.xlu0 %v975, 16
        %v1464 = vpop.permute.xlu0 %1463
        %1465 = vrot.lane.b32.xlu0 %v979, 16
        %v1466 = vpop.permute.xlu0 %1465
        %1467 = vrot.lane.b32.xlu0 %v983, 16
        %v1468 = vpop.permute.xlu0 %1467
        %1469 = vrot.lane.b32.xlu0 %v972, 16
        %v1470 = vpop.permute.xlu0 %1469
        %1471 = vrot.lane.b32.xlu0 %v976, 16
        %v1472 = vpop.permute.xlu0 %1471
        %1473 = vrot.lane.b32.xlu0 %v980, 16
        %v1474 = vpop.permute.xlu0 %1473
        %1475 = vrot.lane.b32.xlu0 %v984, 16
        %v1476 = vpop.permute.xlu0 %1475
        %v1477 = vsel %vm376, %v1462, %v1470
        %v1478 = vsel %vm376, %v1464, %v1472
        %v1479 = vsel %vm376, %v1466, %v1474
        %v1480 = vsel %vm376, %v1468, %v1476
        %v1481 = vsel %vm376, %v1470, %v1462
        %v1482 = vsel %vm376, %v1472, %v1464
        %v1483 = vsel %vm376, %v1474, %v1466
        %v1484 = vsel %vm376, %v1476, %v1468
        %v1485 = vld [vmem:[%s379] ss:$8 sm:$0x3]
        %v1487 = vlaneseq
        %v1488 = vshrl.u32 %v1487, 7
        %v1489 = vsub.s32 0, %v1488
        %v1490 = vrot.slane %v1485, %v1489
        %v1491 = vlaneseq
        %v1492 = vshrl.u32 %v1491, 7
        %v1493 = vsub.s32 1, %v1492
        %v1494 = vrot.slane %v1485, %v1493
        %v1497 = vmul.f32 %v1481, %v1490
        %v1498 = vmul.f32 %v1477, %v1494
        %v1499 = vmul.f32 %v1482, %v1490
        %v1500 = vmul.f32 %v1478, %v1494
        %v1501 = vmul.f32 %v1483, %v1490
        %v1502 = vmul.f32 %v1479, %v1494
        %v1503 = vmul.f32 %v1484, %v1490
        %v1504 = vmul.f32 %v1480, %v1494
        %v1505 = vpack.c.bf16 %v1499, %v1497
        %v1506 = vpack.c.bf16 %v1500, %v1498
        %v1507 = vpack.c.bf16 %v1503, %v1501
        %v1508 = vpack.c.bf16 %v1504, %v1502
        %1509 = vst [vmem:[#allocation3 + $0x50] sm:$0xff] %v1505
        %1510 = vst [vmem:[#allocation3 + $0x58] sm:$0xff] %v1506
        %1511 = vst [vmem:[#allocation3 + $0x70] sm:$0xff] %v1507
        %1512 = vst [vmem:[#allocation3 + $0x78] sm:$0xff] %v1508
        %1513 = vrot.lane.b32.xlu0 %v971, 15
        %v1514 = vpop.permute.xlu0 %1513
        %1515 = vrot.lane.b32.xlu0 %v975, 15
        %v1516 = vpop.permute.xlu0 %1515
        %1517 = vrot.lane.b32.xlu0 %v979, 15
        %v1518 = vpop.permute.xlu0 %1517
        %1519 = vrot.lane.b32.xlu0 %v983, 15
        %v1520 = vpop.permute.xlu0 %1519
        %1521 = vrot.lane.b32.xlu0 %v972, 15
        %v1522 = vpop.permute.xlu0 %1521
        %1523 = vrot.lane.b32.xlu0 %v976, 15
        %v1524 = vpop.permute.xlu0 %1523
        %1525 = vrot.lane.b32.xlu0 %v980, 15
        %v1526 = vpop.permute.xlu0 %1525
        %1527 = vrot.lane.b32.xlu0 %v984, 15
        %v1528 = vpop.permute.xlu0 %1527
        %v1529 = vsel %vm406, %v1514, %v1522
        %v1530 = vsel %vm406, %v1516, %v1524
        %v1531 = vsel %vm406, %v1518, %v1526
        %v1532 = vsel %vm406, %v1520, %v1528
        %v1533 = vsel %vm406, %v1522, %v1514
        %v1534 = vsel %vm406, %v1524, %v1516
        %v1535 = vsel %vm406, %v1526, %v1518
        %v1536 = vsel %vm406, %v1528, %v1520
        %v1537 = vld [vmem:[%s409] ss:$8 sm:$0x3]
        %v1539 = vlaneseq
        %v1540 = vshrl.u32 %v1539, 7
        %v1541 = vsub.s32 0, %v1540
        %v1542 = vrot.slane %v1537, %v1541
        %v1543 = vlaneseq
        %v1544 = vshrl.u32 %v1543, 7
        %v1545 = vsub.s32 1, %v1544
        %v1546 = vrot.slane %v1537, %v1545
        %v1549 = vmul.f32 %v1533, %v1542
        %v1550 = vmul.f32 %v1529, %v1546
        %v1551 = vmul.f32 %v1534, %v1542
        %v1552 = vmul.f32 %v1530, %v1546
        %v1553 = vmul.f32 %v1535, %v1542
        %v1554 = vmul.f32 %v1531, %v1546
        %v1555 = vmul.f32 %v1536, %v1542
        %v1556 = vmul.f32 %v1532, %v1546
        %v1557 = vpack.c.bf16 %v1551, %v1549
        %v1558 = vpack.c.bf16 %v1552, %v1550
        %v1559 = vpack.c.bf16 %v1555, %v1553
        %v1560 = vpack.c.bf16 %v1556, %v1554
        %1561 = vst [vmem:[#allocation3 + $0x90] sm:$0xff] %v1557
        %1562 = vst [vmem:[#allocation3 + $0x98] sm:$0xff] %v1558
        %1563 = vst [vmem:[#allocation3 + $0xb0] sm:$0xff] %v1559
        %1564 = vst [vmem:[#allocation3 + $0xb8] sm:$0xff] %v1560
        %1565 = vrot.lane.b32.xlu0 %v971, 1
        %v1566 = vpop.permute.xlu0 %1565
        %1567 = vrot.lane.b32.xlu0 %v975, 1
        %v1568 = vpop.permute.xlu0 %1567
        %1569 = vrot.lane.b32.xlu0 %v979, 1
        %v1570 = vpop.permute.xlu0 %1569
        %1571 = vrot.lane.b32.xlu0 %v983, 1
        %v1572 = vpop.permute.xlu0 %1571
        %1573 = vrot.lane.b32.xlu0 %v972, 1
        %v1574 = vpop.permute.xlu0 %1573
        %1575 = vrot.lane.b32.xlu0 %v976, 1
        %v1576 = vpop.permute.xlu0 %1575
        %1577 = vrot.lane.b32.xlu0 %v980, 1
        %v1578 = vpop.permute.xlu0 %1577
        %1579 = vrot.lane.b32.xlu0 %v984, 1
        %v1580 = vpop.permute.xlu0 %1579
        %v1581 = vsel %vm430, %v1566, %v1574
        %v1582 = vsel %vm430, %v1568, %v1576
        %v1583 = vsel %vm430, %v1570, %v1578
        %v1584 = vsel %vm430, %v1572, %v1580
        %v1585 = vsel %vm430, %v1574, %v1566
        %v1586 = vsel %vm430, %v1576, %v1568
        %v1587 = vsel %vm430, %v1578, %v1570
        %v1588 = vsel %vm430, %v1580, %v1572
        %v1589 = vld [vmem:[%s433] ss:$8 sm:$0x3]
        %v1591 = vlaneseq
        %v1592 = vshrl.u32 %v1591, 7
        %v1593 = vsub.s32 0, %v1592
        %v1594 = vrot.slane %v1589, %v1593
        %v1595 = vlaneseq
        %v1596 = vshrl.u32 %v1595, 7
        %v1597 = vsub.s32 1, %v1596
        %v1598 = vrot.slane %v1589, %v1597
        %v1601 = vmul.f32 %v1585, %v1594
        %v1602 = vmul.f32 %v1581, %v1598
        %v1603 = vmul.f32 %v1586, %v1594
        %v1604 = vmul.f32 %v1582, %v1598
        %v1605 = vmul.f32 %v1587, %v1594
        %v1606 = vmul.f32 %v1583, %v1598
        %v1607 = vmul.f32 %v1588, %v1594
        %v1608 = vmul.f32 %v1584, %v1598
        %v1609 = vpack.c.bf16 %v1603, %v1601
        %v1610 = vpack.c.bf16 %v1604, %v1602
        %v1611 = vpack.c.bf16 %v1607, %v1605
        %v1612 = vpack.c.bf16 %v1608, %v1606
        %1613 = vst [vmem:[#allocation3 + $0xd0] sm:$0xff] %v1609
        %1614 = vst [vmem:[#allocation3 + $0xd8] sm:$0xff] %v1610
        %1615 = vst [vmem:[#allocation3 + $0xf0] sm:$0xff] %v1611
        %1616 = vst [vmem:[#allocation3 + $0xf8] sm:$0xff] %v1612
        %v1617 = vpack.c.bf16 %v975, %v971
        %v1618 = vpack.c.bf16 %v976, %v972
        %v1619 = vpack.c.bf16 %v983, %v979
        %v1620 = vpack.c.bf16 %v984, %v980
        %1621 = vst [vmem:[#allocation3 + $0x110] sm:$0xff] %v1617
        %1622 = vst [vmem:[#allocation3 + $0x118] sm:$0xff] %v1618
        %1623 = vst [vmem:[#allocation3 + $0x130] sm:$0xff] %v1619
        %1624 = vst [vmem:[#allocation3 + $0x138] sm:$0xff] %v1620
        %1625 = vrot.lane.b32.xlu0 %v971, 127
        %v1626 = vpop.permute.xlu0 %1625
        %1627 = vrot.lane.b32.xlu0 %v975, 127
        %v1628 = vpop.permute.xlu0 %1627
        %1629 = vrot.lane.b32.xlu0 %v979, 127
        %v1630 = vpop.permute.xlu0 %1629
        %1631 = vrot.lane.b32.xlu0 %v983, 127
        %v1632 = vpop.permute.xlu0 %1631
        %1633 = vrot.lane.b32.xlu0 %v972, 127
        %v1634 = vpop.permute.xlu0 %1633
        %1635 = vrot.lane.b32.xlu0 %v976, 127
        %v1636 = vpop.permute.xlu0 %1635
        %1637 = vrot.lane.b32.xlu0 %v980, 127
        %v1638 = vpop.permute.xlu0 %1637
        %1639 = vrot.lane.b32.xlu0 %v984, 127
        %v1640 = vpop.permute.xlu0 %1639
        %v1641 = vsel %vm462, %v1626, %v1634
        %v1642 = vsel %vm462, %v1628, %v1636
        %v1643 = vsel %vm462, %v1630, %v1638
        %v1644 = vsel %vm462, %v1632, %v1640
        %v1645 = vsel %vm462, %v1634, %v1626
        %v1646 = vsel %vm462, %v1636, %v1628
        %v1647 = vsel %vm462, %v1638, %v1630
        %v1648 = vsel %vm462, %v1640, %v1632
        %v1649 = vld [vmem:[%s465] ss:$8 sm:$0x3]
        %v1651 = vlaneseq
        %v1652 = vshrl.u32 %v1651, 7
        %v1653 = vsub.s32 0, %v1652
        %v1654 = vrot.slane %v1649, %v1653
        %v1655 = vlaneseq
        %v1656 = vshrl.u32 %v1655, 7
        %v1657 = vsub.s32 1, %v1656
        %v1658 = vrot.slane %v1649, %v1657
        %v1661 = vmul.f32 %v1641, %v1654
        %v1662 = vmul.f32 %v1645, %v1658
        %v1663 = vmul.f32 %v1642, %v1654
        %v1664 = vmul.f32 %v1646, %v1658
        %v1665 = vmul.f32 %v1643, %v1654
        %v1666 = vmul.f32 %v1647, %v1658
        %v1667 = vmul.f32 %v1644, %v1654
        %v1668 = vmul.f32 %v1648, %v1658
        %v1669 = vpack.c.bf16 %v1663, %v1661
        %v1670 = vpack.c.bf16 %v1664, %v1662
        %v1671 = vpack.c.bf16 %v1667, %v1665
        %v1672 = vpack.c.bf16 %v1668, %v1666
        %1673 = vst [vmem:[#allocation3 + $0x150] sm:$0xff] %v1669
        %1674 = vst [vmem:[#allocation3 + $0x158] sm:$0xff] %v1670
        %1675 = vst [vmem:[#allocation3 + $0x170] sm:$0xff] %v1671
        %1676 = vst [vmem:[#allocation3 + $0x178] sm:$0xff] %v1672
        %1677 = vrot.lane.b32.xlu0 %v971, 113
        %v1678 = vpop.permute.xlu0 %1677
        %1679 = vrot.lane.b32.xlu0 %v975, 113
        %v1680 = vpop.permute.xlu0 %1679
        %1681 = vrot.lane.b32.xlu0 %v979, 113
        %v1682 = vpop.permute.xlu0 %1681
        %1683 = vrot.lane.b32.xlu0 %v983, 113
        %v1684 = vpop.permute.xlu0 %1683
        %1685 = vrot.lane.b32.xlu0 %v972, 113
        %v1686 = vpop.permute.xlu0 %1685
        %1687 = vrot.lane.b32.xlu0 %v976, 113
        %v1688 = vpop.permute.xlu0 %1687
        %1689 = vrot.lane.b32.xlu0 %v980, 113
        %v1690 = vpop.permute.xlu0 %1689
        %1691 = vrot.lane.b32.xlu0 %v984, 113
        %v1692 = vpop.permute.xlu0 %1691
        %v1693 = vsel %vm492, %v1678, %v1686
        %v1694 = vsel %vm492, %v1680, %v1688
        %v1695 = vsel %vm492, %v1682, %v1690
        %v1696 = vsel %vm492, %v1684, %v1692
        %v1697 = vsel %vm492, %v1686, %v1678
        %v1698 = vsel %vm492, %v1688, %v1680
        %v1699 = vsel %vm492, %v1690, %v1682
        %v1700 = vsel %vm492, %v1692, %v1684
        %v1701 = vld [vmem:[%s495] ss:$8 sm:$0x3]
        %v1703 = vlaneseq
        %v1704 = vshrl.u32 %v1703, 7
        %v1705 = vsub.s32 0, %v1704
        %v1706 = vrot.slane %v1701, %v1705
        %v1707 = vlaneseq
        %v1708 = vshrl.u32 %v1707, 7
        %v1709 = vsub.s32 1, %v1708
        %v1710 = vrot.slane %v1701, %v1709
        %v1713 = vmul.f32 %v1693, %v1706
        %v1714 = vmul.f32 %v1697, %v1710
        %v1715 = vmul.f32 %v1694, %v1706
        %v1716 = vmul.f32 %v1698, %v1710
        %v1717 = vmul.f32 %v1695, %v1706
        %v1718 = vmul.f32 %v1699, %v1710
        %v1719 = vmul.f32 %v1696, %v1706
        %v1720 = vmul.f32 %v1700, %v1710
        %v1721 = vpack.c.bf16 %v1715, %v1713
        %v1722 = vpack.c.bf16 %v1716, %v1714
        %v1723 = vpack.c.bf16 %v1719, %v1717
        %v1724 = vpack.c.bf16 %v1720, %v1718
        %1725 = vst [vmem:[#allocation3 + $0x190] sm:$0xff] %v1721
        %1726 = vst [vmem:[#allocation3 + $0x198] sm:$0xff] %v1722
        %1727 = vst [vmem:[#allocation3 + $0x1b0] sm:$0xff] %v1723
        %1728 = vst [vmem:[#allocation3 + $0x1b8] sm:$0xff] %v1724
        %1729 = vrot.lane.b32.xlu0 %v971, 112
        %v1730 = vpop.permute.xlu0 %1729
        %1731 = vrot.lane.b32.xlu0 %v975, 112
        %v1732 = vpop.permute.xlu0 %1731
        %1733 = vrot.lane.b32.xlu0 %v979, 112
        %v1734 = vpop.permute.xlu0 %1733
        %1735 = vrot.lane.b32.xlu0 %v983, 112
        %v1736 = vpop.permute.xlu0 %1735
        %1737 = vrot.lane.b32.xlu0 %v972, 112
        %v1738 = vpop.permute.xlu0 %1737
        %1739 = vrot.lane.b32.xlu0 %v976, 112
        %v1740 = vpop.permute.xlu0 %1739
        %1741 = vrot.lane.b32.xlu0 %v980, 112
        %v1742 = vpop.permute.xlu0 %1741
        %1743 = vrot.lane.b32.xlu0 %v984, 112
        %v1744 = vpop.permute.xlu0 %1743
        %v1745 = vsel %vm516, %v1730, %v1738
        %v1746 = vsel %vm516, %v1732, %v1740
        %v1747 = vsel %vm516, %v1734, %v1742
        %v1748 = vsel %vm516, %v1736, %v1744
        %v1749 = vsel %vm516, %v1738, %v1730
        %v1750 = vsel %vm516, %v1740, %v1732
        %v1751 = vsel %vm516, %v1742, %v1734
        %v1752 = vsel %vm516, %v1744, %v1736
        %v1753 = vld [vmem:[%s519] ss:$8 sm:$0x3]
        %v1755 = vlaneseq
        %v1756 = vshrl.u32 %v1755, 7
        %v1757 = vsub.s32 0, %v1756
        %v1758 = vrot.slane %v1753, %v1757
        %v1759 = vlaneseq
        %v1760 = vshrl.u32 %v1759, 7
        %v1761 = vsub.s32 1, %v1760
        %v1762 = vrot.slane %v1753, %v1761
        %v1765 = vmul.f32 %v1745, %v1758
        %v1766 = vmul.f32 %v1749, %v1762
        %v1767 = vmul.f32 %v1746, %v1758
        %v1768 = vmul.f32 %v1750, %v1762
        %v1769 = vmul.f32 %v1747, %v1758
        %v1770 = vmul.f32 %v1751, %v1762
        %v1771 = vmul.f32 %v1748, %v1758
        %v1772 = vmul.f32 %v1752, %v1762
        %v1773 = vpack.c.bf16 %v1767, %v1765
        %v1774 = vpack.c.bf16 %v1768, %v1766
        %v1775 = vpack.c.bf16 %v1771, %v1769
        %v1776 = vpack.c.bf16 %v1772, %v1770
        %1777 = vst [vmem:[#allocation3 + $0x1d0] sm:$0xff] %v1773
        %1778 = vst [vmem:[#allocation3 + $0x1d8] sm:$0xff] %v1774
        %1779 = vst [vmem:[#allocation3 + $0x1f0] sm:$0xff] %v1775
        %1780 = vst [vmem:[#allocation3 + $0x1f8] sm:$0xff] %v1776
        %1781 = vrot.lane.b32.xlu0 %v971, 111
        %v1782 = vpop.permute.xlu0 %1781
        %1783 = vrot.lane.b32.xlu0 %v975, 111
        %v1784 = vpop.permute.xlu0 %1783
        %1785 = vrot.lane.b32.xlu0 %v979, 111
        %v1786 = vpop.permute.xlu0 %1785
        %1787 = vrot.lane.b32.xlu0 %v983, 111
        %v1788 = vpop.permute.xlu0 %1787
        %1789 = vrot.lane.b32.xlu0 %v972, 111
        %v1790 = vpop.permute.xlu0 %1789
        %1791 = vrot.lane.b32.xlu0 %v976, 111
        %v1792 = vpop.permute.xlu0 %1791
        %1793 = vrot.lane.b32.xlu0 %v980, 111
        %v1794 = vpop.permute.xlu0 %1793
        %1795 = vrot.lane.b32.xlu0 %v984, 111
        %v1796 = vpop.permute.xlu0 %1795
        %v1797 = vsel %vm546, %v1782, %v1790
        %v1798 = vsel %vm546, %v1784, %v1792
        %v1799 = vsel %vm546, %v1786, %v1794
        %v1800 = vsel %vm546, %v1788, %v1796
        %v1801 = vsel %vm546, %v1790, %v1782
        %v1802 = vsel %vm546, %v1792, %v1784
        %v1803 = vsel %vm546, %v1794, %v1786
        %v1804 = vsel %vm546, %v1796, %v1788
        %v1805 = vld [vmem:[%s549] ss:$8 sm:$0x3]
        %v1807 = vlaneseq
        %v1808 = vshrl.u32 %v1807, 7
        %v1809 = vsub.s32 0, %v1808
        %v1810 = vrot.slane %v1805, %v1809
        %v1811 = vlaneseq
        %v1812 = vshrl.u32 %v1811, 7
        %v1813 = vsub.s32 1, %v1812
        %v1814 = vrot.slane %v1805, %v1813
        %v1817 = vmul.f32 %v1797, %v1810
        %v1818 = vmul.f32 %v1801, %v1814
        %v1819 = vmul.f32 %v1798, %v1810
        %v1820 = vmul.f32 %v1802, %v1814
        %v1821 = vmul.f32 %v1799, %v1810
        %v1822 = vmul.f32 %v1803, %v1814
        %v1823 = vmul.f32 %v1800, %v1810
        %v1824 = vmul.f32 %v1804, %v1814
        %v1825 = vpack.c.bf16 %v1819, %v1817
        %v1826 = vpack.c.bf16 %v1820, %v1818
        %v1827 = vpack.c.bf16 %v1823, %v1821
        %v1828 = vpack.c.bf16 %v1824, %v1822
        %1829 = vst [vmem:[#allocation3 + $0x210] sm:$0xff] %v1825
        %1830 = vst [vmem:[#allocation3 + $0x218] sm:$0xff] %v1826
        %1831 = vst [vmem:[#allocation3 + $0x230] sm:$0xff] %v1827
        %1832 = vst [vmem:[#allocation3 + $0x238] sm:$0xff] %v1828
        %v1833 = vld [vmem:[%s4] sm:$0xff]
        %v1834 = vld [vmem:[%s4 + $0x8] sm:$0xf]
        %v1835 = vld [vmem:[%s4 + $0xc] sm:$0xff]
        %v1836 = vld [vmem:[%s4 + $0x14] sm:$0xf]
        %v1837 = vld [vmem:[%s4 + $0x18] sm:$0xff]
        %v1838 = vld [vmem:[%s4 + $0x20] sm:$0xf]
        %v1839 = vld [vmem:[%s4 + $0x24] sm:$0xff]
        %v1840 = vld [vmem:[%s4 + $0x2c] sm:$0xf]
        %v1841 = vld [vmem:[#allocation3] sm:$0xff]
        %v1842 = vld [vmem:[#allocation3 + $0x8] sm:$0xff]
        %v1843 = vld [vmem:[#allocation3 + $0x10] sm:$0xff]
        %v1844 = vld [vmem:[#allocation3 + $0x18] sm:$0xff]
        %v1845 = vld [vmem:[#allocation3 + $0x20] sm:$0xff]
        %v1846 = vld [vmem:[#allocation3 + $0x28] sm:$0xff]
        %v1847 = vld [vmem:[#allocation3 + $0x30] sm:$0xff]
        %v1848 = vld [vmem:[#allocation3 + $0x38] sm:$0xff]
        %v1849 = vld [vmem:[#allocation3 + $0x40] sm:$0xff]
        %v1850 = vld [vmem:[#allocation3 + $0x48] sm:$0xff]
        %v1851 = vld [vmem:[#allocation3 + $0x50] sm:$0xff]
        %v1852 = vld [vmem:[#allocation3 + $0x58] sm:$0xff]
        %v1853 = vld [vmem:[#allocation3 + $0x60] sm:$0xff]
        %v1854 = vld [vmem:[#allocation3 + $0x68] sm:$0xff]
        %v1855 = vld [vmem:[#allocation3 + $0x70] sm:$0xff]
        %v1856 = vld [vmem:[#allocation3 + $0x78] sm:$0xff]
        %v1857 = vld [vmem:[#allocation3 + $0x80] sm:$0xff]
        %v1858 = vld [vmem:[#allocation3 + $0x88] sm:$0xff]
        %v1859 = vld [vmem:[#allocation3 + $0x90] sm:$0xff]
        %v1860 = vld [vmem:[#allocation3 + $0x98] sm:$0xff]
        %v1861 = vld [vmem:[#allocation3 + $0xa0] sm:$0xff]
        %v1862 = vld [vmem:[#allocation3 + $0xa8] sm:$0xff]
        %v1863 = vld [vmem:[#allocation3 + $0xb0] sm:$0xff]
        %v1864 = vld [vmem:[#allocation3 + $0xb8] sm:$0xff]
        %v1865 = vld [vmem:[#allocation3 + $0xc0] sm:$0xff]
        %v1866 = vld [vmem:[#allocation3 + $0xc8] sm:$0xff]
        %v1867 = vld [vmem:[#allocation3 + $0xd0] sm:$0xff]
        %v1868 = vld [vmem:[#allocation3 + $0xd8] sm:$0xff]
        %v1869 = vld [vmem:[#allocation3 + $0xe0] sm:$0xff]
        %v1870 = vld [vmem:[#allocation3 + $0xe8] sm:$0xff]
        %v1871 = vld [vmem:[#allocation3 + $0xf0] sm:$0xff]
        %v1872 = vld [vmem:[#allocation3 + $0xf8] sm:$0xff]
        %v1873 = vld [vmem:[#allocation3 + $0x100] sm:$0xff]
        %v1874 = vld [vmem:[#allocation3 + $0x108] sm:$0xff]
        %v1875 = vld [vmem:[#allocation3 + $0x110] sm:$0xff]
        %v1876 = vld [vmem:[#allocation3 + $0x118] sm:$0xff]
        %v1877 = vld [vmem:[#allocation3 + $0x120] sm:$0xff]
        %v1878 = vld [vmem:[#allocation3 + $0x128] sm:$0xff]
        %v1879 = vld [vmem:[#allocation3 + $0x130] sm:$0xff]
        %v1880 = vld [vmem:[#allocation3 + $0x138] sm:$0xff]
        %v1881 = vld [vmem:[#allocation3 + $0x140] sm:$0xff]
        %v1882 = vld [vmem:[#allocation3 + $0x148] sm:$0xff]
        %v1883 = vld [vmem:[#allocation3 + $0x150] sm:$0xff]
        %v1884 = vld [vmem:[#allocation3 + $0x158] sm:$0xff]
        %v1885 = vld [vmem:[#allocation3 + $0x160] sm:$0xff]
        %v1886 = vld [vmem:[#allocation3 + $0x168] sm:$0xff]
        %v1887 = vld [vmem:[#allocation3 + $0x170] sm:$0xff]
        %v1888 = vld [vmem:[#allocation3 + $0x178] sm:$0xff]
        %v1889 = vld [vmem:[#allocation3 + $0x180] sm:$0xff]
        %v1890 = vld [vmem:[#allocation3 + $0x188] sm:$0xff]
        %v1891 = vld [vmem:[#allocation3 + $0x190] sm:$0xff]
        %v1892 = vld [vmem:[#allocation3 + $0x198] sm:$0xff]
        %v1893 = vld [vmem:[#allocation3 + $0x1a0] sm:$0xff]
        %v1894 = vld [vmem:[#allocation3 + $0x1a8] sm:$0xff]
        %v1895 = vld [vmem:[#allocation3 + $0x1b0] sm:$0xff]
        %v1896 = vld [vmem:[#allocation3 + $0x1b8] sm:$0xff]
        %v1897 = vld [vmem:[#allocation3 + $0x1c0] sm:$0xff]
        %v1898 = vld [vmem:[#allocation3 + $0x1c8] sm:$0xff]
        %v1899 = vld [vmem:[#allocation3 + $0x1d0] sm:$0xff]
        %v1900 = vld [vmem:[#allocation3 + $0x1d8] sm:$0xff]
        %v1901 = vld [vmem:[#allocation3 + $0x1e0] sm:$0xff]
        %v1902 = vld [vmem:[#allocation3 + $0x1e8] sm:$0xff]
        %v1903 = vld [vmem:[#allocation3 + $0x1f0] sm:$0xff]
        %v1904 = vld [vmem:[#allocation3 + $0x1f8] sm:$0xff]
        %v1905 = vld [vmem:[#allocation3 + $0x200] sm:$0xff]
        %v1906 = vld [vmem:[#allocation3 + $0x208] sm:$0xff]
        %v1907 = vld [vmem:[#allocation3 + $0x210] sm:$0xff]
        %v1908 = vld [vmem:[#allocation3 + $0x218] sm:$0xff]
        %v1909 = vld [vmem:[#allocation3 + $0x220] sm:$0xff]
        %v1910 = vld [vmem:[#allocation3 + $0x228] sm:$0xff]
        %v1911 = vld [vmem:[#allocation3 + $0x230] sm:$0xff]
        %v1912 = vld [vmem:[#allocation3 + $0x238] sm:$0xff]
        %v1913 = vld [vmem:[%s5] sm:$0xff]
        %v1914 = vld [vmem:[%s5 + $0x8] sm:$0xff]
        %v1915 = vld [vmem:[%s5 + $0x10] sm:$0xff]
        %v1916 = vld [vmem:[%s5 + $0x18] sm:$0xff]
        %1918 = vset.pattern.permute.xlu0 0
        %1919 = vperm.xlu0 %1918, %v1913
        %v1920 = vpop.permute.xlu0 %1919
        %1923 = vset.pattern.permute.xlu0 0
        %1924 = vperm.xlu0 %1923, %v1914
        %v1925 = vpop.permute.xlu0 %1924
        %1928 = vset.pattern.permute.xlu0 0
        %1929 = vperm.xlu0 %1928, %v1915
        %v1930 = vpop.permute.xlu0 %1929
        %1933 = vset.pattern.permute.xlu0 0
        %1934 = vperm.xlu0 %1933, %v1916
        %v1935 = vpop.permute.xlu0 %1934
        %v1945 = vunpack.c.l.b16 %v1833
        %v1946 = vunpack.c.h.b16 %v1833
        %v1947 = vunpack.c.l.b16 %v1834
        %v1948 = vunpack.c.l.b16 %v1835
        %v1949 = vunpack.c.h.b16 %v1835
        %v1950 = vunpack.c.l.b16 %v1836
        %v1951 = vunpack.c.l.b16 %v1837
        %v1952 = vunpack.c.h.b16 %v1837
        %v1953 = vunpack.c.l.b16 %v1838
        %v1954 = vunpack.c.l.b16 %v1839
        %v1955 = vunpack.c.h.b16 %v1839
        %v1956 = vunpack.c.l.b16 %v1840
        %v1957 = vpack.c.b16 %v1948, %v1945
        %v1958 = vpack.c.b16 %v1949, %v1946
        %v1959 = vpack.c.b16 %v1950, %v1947
        %v1960 = vpack.c.b16 %v1954, %v1951
        %v1961 = vpack.c.b16 %v1955, %v1952
        %v1962 = vpack.c.b16 %v1956, %v1953
        %vm1967 = vcmask 261120
        %v1969 = vsel %vm1967, %v1959, 0
        %v1972 = vsel %vm1967, %v1962, 0
        %1974 = vmatprep.subr.bf16.mxu0 %v1842
        %1975 = vmatpush1.bf16.msra.mxu0 %v1841
        %1976 = vmatprep.subr.bf16.mxu0 %v1846
        %1977 = vmatpush1.bf16.msra.mxu0 %v1845
        %1978 = vmatprep.subr.bf16.mxu0 %v1850
        %1979 = vmatpush1.bf16.msra.mxu0 %v1849
        %1980 = vmatprep.subr.bf16.mxu0 %v1854
        %1981 = vmatpush1.bf16.msra.mxu0 %v1853
        %1982 = vmatprep.subr.bf16.mxu0 %v1858
        %1983 = vmatpush1.bf16.msra.mxu0 %v1857
        %1984 = vmatprep.subr.bf16.mxu0 %v1862
        %1985 = vmatpush1.bf16.msra.mxu0 %v1861
        %1986 = vmatprep.subr.bf16.mxu0 %v1866
        %1987 = vmatpush1.bf16.msra.mxu0 %v1865
        %1988 = vmatprep.subr.bf16.mxu0 %v1870
        %1989 = vmatpush1.bf16.msra.mxu0 %v1869
        %1990 = vmatprep.subr.bf16.mxu0 %v1874
        %1991 = vmatpush1.bf16.msra.mxu0 %v1873
        %1992 = vmatprep.subr.bf16.mxu0 %v1878
        %1993 = vmatpush1.bf16.msra.mxu0 %v1877
        %1994 = vmatprep.subr.bf16.mxu0 %v1882
        %1995 = vmatpush1.bf16.msra.mxu0 %v1881
        %1996 = vmatprep.subr.bf16.mxu0 %v1886
        %1997 = vmatpush1.bf16.msra.mxu0 %v1885
        %1998 = vmatprep.subr.bf16.mxu0 %v1890
        %1999 = vmatpush1.bf16.msra.mxu0 %v1889
        %2000 = vmatprep.subr.bf16.mxu0 %v1894
        %2001 = vmatpush1.bf16.msra.mxu0 %v1893
        %2002 = vmatprep.subr.bf16.mxu0 %v1898
        %2003 = vmatpush1.bf16.msra.mxu0 %v1897
        %2004 = vmatprep.subr.bf16.mxu0 %v1902
        %2005 = vmatpush1.bf16.msra.mxu0 %v1901
        %2006 = vmatprep.mubr.bf16.mxu0 %v1958
        %2007 = vmatmul.mubr.bf16.gmra.mrb[0].mxu0 %v1957
        %v2008 = vpop.f32.mrb[0].mxu0
        %v2009 = vadd.f32 %v1920, %v2008
        %v2010 = vpop.f32.mrb[0].mxu0
        %v2011 = vadd.f32 %v1920, %v2010
        %v2012 = vpop.f32.mrb[0].mxu0
        %v2013 = vadd.f32 %v1925, %v2012
        %v2014 = vpop.f32.mrb[0].mxu0
        %v2015 = vadd.f32 %v1925, %v2014
        %2016 = vmatprep.mubr.bf16.mxu0 %v1961
        %2017 = vmatmul.mubr.bf16.gmra.mrb[0].mxu0 %v1960
        %v2018 = vpop.f32.mrb[0].mxu0
        %v2019 = vadd.f32 %v1930, %v2018
        %v2020 = vpop.f32.mrb[0].mxu0
        %v2021 = vadd.f32 %v1930, %v2020
        %v2022 = vpop.f32.mrb[0].mxu0
        %v2023 = vadd.f32 %v1935, %v2022
        %v2024 = vpop.f32.mrb[0].mxu0
        %v2025 = vadd.f32 %v1935, %v2024
        %2026 = vdwg.mxu0
        %2027 = vmatprep.subr.bf16.mxu0 %v1906
        %2028 = vmatpush1.bf16.msra.mxu0 %v1905
        %2029 = vmatprep.subr.bf16.mxu0 %v1910
        %2030 = vmatpush1.bf16.msra.mxu0 %v1909
        %2031 = vmatprep.subr.bf16.mxu0 0
        %2032 = vmatpush1.bf16.msra.mxu0 0
        %2033 = vmatprep.subr.bf16.mxu0 0
        %2034 = vmatpush1.bf16.msra.mxu0 0
        %2035 = vmatprep.subr.bf16.mxu0 0
        %2036 = vmatpush1.bf16.msra.mxu0 0
        %2037 = vmatprep.subr.bf16.mxu0 0
        %2038 = vmatpush1.bf16.msra.mxu0 0
        %2039 = vmatprep.subr.bf16.mxu0 0
        %2040 = vmatpush1.bf16.msra.mxu0 0
        %2041 = vmatprep.subr.bf16.mxu0 0
        %2042 = vmatpush1.bf16.msra.mxu0 0
        %2043 = vmatprep.subr.bf16.mxu0 0
        %2044 = vmatpush1.bf16.msra.mxu0 0
        %2045 = vmatprep.subr.bf16.mxu0 0
        %2046 = vmatpush1.bf16.msra.mxu0 0
        %2047 = vmatprep.subr.bf16.mxu0 0
        %2048 = vmatpush1.bf16.msra.mxu0 0
        %2049 = vmatprep.subr.bf16.mxu0 0
        %2050 = vmatpush1.bf16.msra.mxu0 0
        %2051 = vmatprep.subr.bf16.mxu0 0
        %2052 = vmatpush1.bf16.msra.mxu0 0
        %2053 = vmatprep.subr.bf16.mxu0 0
        %2054 = vmatpush1.bf16.msra.mxu0 0
        %2055 = vmatprep.subr.bf16.mxu0 0
        %2056 = vmatpush1.bf16.msra.mxu0 0
        %2057 = vmatprep.subr.bf16.mxu0 0
        %2058 = vmatpush1.bf16.msra.mxu0 0
        %2059 = vmatprep.mubr.bf16.mxu0 0
        %2060 = vmatmul.mubr.bf16.gmra.mrb[0].mxu0 %v1969
        %v2061 = vpop.f32.mrb[0].mxu0
        %v2062 = vadd.f32 %v2009, %v2061
        %v2063 = vpop.f32.mrb[0].mxu0
        %v2064 = vadd.f32 %v2011, %v2063
        %v2065 = vpop.f32.mrb[0].mxu0
        %v2066 = vadd.f32 %v2013, %v2065
        %v2067 = vpop.f32.mrb[0].mxu0
        %v2068 = vadd.f32 %v2015, %v2067
        %2069 = vmatprep.mubr.bf16.mxu0 0
        %2070 = vmatmul.mubr.bf16.gmra.mrb[0].mxu0 %v1972
        %v2071 = vpop.f32.mrb[0].mxu0
        %v2072 = vadd.f32 %v2019, %v2071
        %v2073 = vpop.f32.mrb[0].mxu0
        %v2074 = vadd.f32 %v2021, %v2073
        %v2075 = vpop.f32.mrb[0].mxu0
        %v2076 = vadd.f32 %v2023, %v2075
        %v2077 = vpop.f32.mrb[0].mxu0
        %v2078 = vadd.f32 %v2025, %v2077
        %2079 = vdwg.mxu0
        %2080 = vmatprep.subr.bf16.mxu0 %v1844
        %2081 = vmatpush1.bf16.msra.mxu0 %v1843
        %2082 = vmatprep.subr.bf16.mxu0 %v1848
        %2083 = vmatpush1.bf16.msra.mxu0 %v1847
        %2084 = vmatprep.subr.bf16.mxu0 %v1852
        %2085 = vmatpush1.bf16.msra.mxu0 %v1851
        %2086 = vmatprep.subr.bf16.mxu0 %v1856
        %2087 = vmatpush1.bf16.msra.mxu0 %v1855
        %2088 = vmatprep.subr.bf16.mxu0 %v1860
        %2089 = vmatpush1.bf16.msra.mxu0 %v1859
        %2090 = vmatprep.subr.bf16.mxu0 %v1864
        %2091 = vmatpush1.bf16.msra.mxu0 %v1863
        %2092 = vmatprep.subr.bf16.mxu0 %v1868
        %2093 = vmatpush1.bf16.msra.mxu0 %v1867
        %2094 = vmatprep.subr.bf16.mxu0 %v1872
        %2095 = vmatpush1.bf16.msra.mxu0 %v1871
        %2096 = vmatprep.subr.bf16.mxu0 %v1876
        %2097 = vmatpush1.bf16.msra.mxu0 %v1875
        %2098 = vmatprep.subr.bf16.mxu0 %v1880
        %2099 = vmatpush1.bf16.msra.mxu0 %v1879
        %2100 = vmatprep.subr.bf16.mxu0 %v1884
        %2101 = vmatpush1.bf16.msra.mxu0 %v1883
        %2102 = vmatprep.subr.bf16.mxu0 %v1888
        %2103 = vmatpush1.bf16.msra.mxu0 %v1887
        %2104 = vmatprep.subr.bf16.mxu0 %v1892
        %2105 = vmatpush1.bf16.msra.mxu0 %v1891
        %2106 = vmatprep.subr.bf16.mxu0 %v1896
        %2107 = vmatpush1.bf16.msra.mxu0 %v1895
        %2108 = vmatprep.subr.bf16.mxu0 %v1900
        %2109 = vmatpush1.bf16.msra.mxu0 %v1899
        %2110 = vmatprep.subr.bf16.mxu0 %v1904
        %2111 = vmatpush1.bf16.msra.mxu0 %v1903
        %2112 = vmatprep.mubr.bf16.mxu0 %v1958
        %2113 = vmatmul.mubr.bf16.gmra.mrb[0].mxu0 %v1957
        %v2114 = vpop.f32.mrb[0].mxu0
        %v2115 = vadd.f32 %v1920, %v2114
        %v2116 = vpop.f32.mrb[0].mxu0
        %v2117 = vadd.f32 %v1920, %v2116
        %v2118 = vpop.f32.mrb[0].mxu0
        %v2119 = vadd.f32 %v1925, %v2118
        %v2120 = vpop.f32.mrb[0].mxu0
        %v2121 = vadd.f32 %v1925, %v2120
        %2122 = vmatprep.mubr.bf16.mxu0 %v1961
        %2123 = vmatmul.mubr.bf16.gmra.mrb[0].mxu0 %v1960
        %v2124 = vpop.f32.mrb[0].mxu0
        %v2125 = vadd.f32 %v1930, %v2124
        %v2126 = vpop.f32.mrb[0].mxu0
        %v2127 = vadd.f32 %v1930, %v2126
        %v2128 = vpop.f32.mrb[0].mxu0
        %v2129 = vadd.f32 %v1935, %v2128
        %v2130 = vpop.f32.mrb[0].mxu0
        %v2131 = vadd.f32 %v1935, %v2130
        %2132 = vdwg.mxu0
        %2133 = vmatprep.subr.bf16.mxu0 %v1908
        %2134 = vmatpush1.bf16.msra.mxu0 %v1907
        %2135 = vmatprep.subr.bf16.mxu0 %v1912
        %2136 = vmatpush1.bf16.msra.mxu0 %v1911
        %2137 = vmatprep.subr.bf16.mxu0 0
        %2138 = vmatpush1.bf16.msra.mxu0 0
        %2139 = vmatprep.subr.bf16.mxu0 0
        %2140 = vmatpush1.bf16.msra.mxu0 0
        %2141 = vmatprep.subr.bf16.mxu0 0
        %2142 = vmatpush1.bf16.msra.mxu0 0
        %2143 = vmatprep.subr.bf16.mxu0 0
        %2144 = vmatpush1.bf16.msra.mxu0 0
        %2145 = vmatprep.subr.bf16.mxu0 0
        %2146 = vmatpush1.bf16.msra.mxu0 0
        %2147 = vmatprep.subr.bf16.mxu0 0
        %2148 = vmatpush1.bf16.msra.mxu0 0
        %2149 = vmatprep.subr.bf16.mxu0 0
        %2150 = vmatpush1.bf16.msra.mxu0 0
        %2151 = vmatprep.subr.bf16.mxu0 0
        %2152 = vmatpush1.bf16.msra.mxu0 0
        %2153 = vmatprep.subr.bf16.mxu0 0
        %2154 = vmatpush1.bf16.msra.mxu0 0
        %2155 = vmatprep.subr.bf16.mxu0 0
        %2156 = vmatpush1.bf16.msra.mxu0 0
        %2157 = vmatprep.subr.bf16.mxu0 0
        %2158 = vmatpush1.bf16.msra.mxu0 0
        %2159 = vmatprep.subr.bf16.mxu0 0
        %2160 = vmatpush1.bf16.msra.mxu0 0
        %2161 = vmatprep.subr.bf16.mxu0 0
        %2162 = vmatpush1.bf16.msra.mxu0 0
        %2163 = vmatprep.subr.bf16.mxu0 0
        %2164 = vmatpush1.bf16.msra.mxu0 0
        %2165 = vmatprep.mubr.bf16.mxu0 0
        %2166 = vmatmul.mubr.bf16.gmra.mrb[0].mxu0 %v1969
        %v2167 = vpop.f32.mrb[0].mxu0
        %v2168 = vadd.f32 %v2115, %v2167
        %v2169 = vpop.f32.mrb[0].mxu0
        %v2170 = vadd.f32 %v2117, %v2169
        %v2171 = vpop.f32.mrb[0].mxu0
        %v2172 = vadd.f32 %v2119, %v2171
        %v2173 = vpop.f32.mrb[0].mxu0
        %v2174 = vadd.f32 %v2121, %v2173
        %2175 = vmatprep.mubr.bf16.mxu0 0
        %2176 = vmatmul.mubr.bf16.gmra.mrb[0].mxu0 %v1972
        %v2177 = vpop.f32.mrb[0].mxu0
        %v2178 = vadd.f32 %v2125, %v2177
        %v2179 = vpop.f32.mrb[0].mxu0
        %v2180 = vadd.f32 %v2127, %v2179
        %v2181 = vpop.f32.mrb[0].mxu0
        %v2182 = vadd.f32 %v2129, %v2181
        %v2183 = vpop.f32.mrb[0].mxu0
        %v2184 = vadd.f32 %v2131, %v2183
        %2185 = vdwg.mxu0
        %v2186 = vmax.f32 %v2062, 0.0
        %v2187 = vmax.f32 %v2064, 0.0
        %v2188 = vmax.f32 %v2168, 0.0
        %v2189 = vmax.f32 %v2170, 0.0
        %v2190 = vmax.f32 %v2066, 0.0
        %v2191 = vmax.f32 %v2068, 0.0
        %v2192 = vmax.f32 %v2172, 0.0
        %v2193 = vmax.f32 %v2174, 0.0
        %v2194 = vmax.f32 %v2072, 0.0
        %v2195 = vmax.f32 %v2074, 0.0
        %v2196 = vmax.f32 %v2178, 0.0
        %v2197 = vmax.f32 %v2180, 0.0
        %v2198 = vmax.f32 %v2076, 0.0
        %v2199 = vmax.f32 %v2078, 0.0
        %v2200 = vmax.f32 %v2182, 0.0
        %v2201 = vmax.f32 %v2184, 0.0
        %v2202 = vld [vmem:[%s6] sm:$0xf]
        %v2203 = vld [vmem:[%s6 + $0x4] sm:$0xf]
        %v2204 = vpack.c.bf16 %v2190, %v2186
        %v2205 = vpack.c.bf16 %v2191, %v2187
        %v2206 = vpack.c.bf16 %v2192, %v2188
        %v2207 = vpack.c.bf16 %v2193, %v2189
        %v2208 = vpack.c.bf16 %v2198, %v2194
        %v2209 = vpack.c.bf16 %v2199, %v2195
        %v2210 = vpack.c.bf16 %v2200, %v2196
        %v2211 = vpack.c.bf16 %v2201, %v2197
        %v2212 = vld [vmem:[%s7] sm:$0xff]
        %v2213 = vld [vmem:[%s7 + $0x8] sm:$0xff]
        %2215 = vset.pattern.permute.xlu0 0
        %2216 = vperm.xlu0 %2215, %v2212
        %v2217 = vpop.permute.xlu0 %2216
        %2220 = vset.pattern.permute.xlu0 0
        %2221 = vperm.xlu0 %2220, %v2213
        %v2222 = vpop.permute.xlu0 %2221
        %v2226 = vunpack.c.l.b16 %v2202
        %v2227 = vunpack.c.l.b16 %v2203
        %v2228 = vpack.c.b16 %v2227, %v2226
        %v2230 = vsel %vm1967, %v2228, 0
        %2232 = vmatprep.subr.bf16.mxu0 %v2205
        %2233 = vmatpush1.bf16.msra.mxu0 %v2204
        %2234 = vmatprep.subr.bf16.mxu0 %v2209
        %2235 = vmatpush1.bf16.msra.mxu0 %v2208
        %2236 = vmatprep.subr.bf16.mxu0 0
        %2237 = vmatpush1.bf16.msra.mxu0 0
        %2238 = vmatprep.subr.bf16.mxu0 0
        %2239 = vmatpush1.bf16.msra.mxu0 0
        %2240 = vmatprep.subr.bf16.mxu0 0
        %2241 = vmatpush1.bf16.msra.mxu0 0
        %2242 = vmatprep.subr.bf16.mxu0 0
        %2243 = vmatpush1.bf16.msra.mxu0 0
        %2244 = vmatprep.subr.bf16.mxu0 0
        %2245 = vmatpush1.bf16.msra.mxu0 0
        %2246 = vmatprep.subr.bf16.mxu0 0
        %2247 = vmatpush1.bf16.msra.mxu0 0
        %2248 = vmatprep.subr.bf16.mxu0 0
        %2249 = vmatpush1.bf16.msra.mxu0 0
        %2250 = vmatprep.subr.bf16.mxu0 0
        %2251 = vmatpush1.bf16.msra.mxu0 0
        %2252 = vmatprep.subr.bf16.mxu0 0
        %2253 = vmatpush1.bf16.msra.mxu0 0
        %2254 = vmatprep.subr.bf16.mxu0 0
        %2255 = vmatpush1.bf16.msra.mxu0 0
        %2256 = vmatprep.subr.bf16.mxu0 0
        %2257 = vmatpush1.bf16.msra.mxu0 0
        %2258 = vmatprep.subr.bf16.mxu0 0
        %2259 = vmatpush1.bf16.msra.mxu0 0
        %2260 = vmatprep.subr.bf16.mxu0 0
        %2261 = vmatpush1.bf16.msra.mxu0 0
        %2262 = vmatprep.subr.bf16.mxu0 0
        %2263 = vmatpush1.bf16.msra.mxu0 0
        %2264 = vmatprep.mubr.bf16.mxu0 0
        %2265 = vmatmul.mubr.bf16.gmra.mrb[0].mxu0 %v2230
        %v2266 = vpop.f32.mrb[0].mxu0
        %v2267 = vadd.f32 %v2217, %v2266
        %v2268 = vpop.f32.mrb[0].mxu0
        %v2269 = vadd.f32 %v2217, %v2268
        %v2270 = vpop.f32.mrb[0].mxu0
        %v2271 = vadd.f32 %v2222, %v2270
        %v2272 = vpop.f32.mrb[0].mxu0
        %v2273 = vadd.f32 %v2222, %v2272
        %2274 = vdwg.mxu0
        %2275 = vmatprep.subr.bf16.mxu0 %v2207
        %2276 = vmatpush1.bf16.msra.mxu0 %v2206
        %2277 = vmatprep.subr.bf16.mxu0 %v2211
        %2278 = vmatpush1.bf16.msra.mxu0 %v2210
        %2279 = vmatprep.subr.bf16.mxu0 0
        %2280 = vmatpush1.bf16.msra.mxu0 0
        %2281 = vmatprep.subr.bf16.mxu0 0
        %2282 = vmatpush1.bf16.msra.mxu0 0
        %2283 = vmatprep.subr.bf16.mxu0 0
        %2284 = vmatpush1.bf16.msra.mxu0 0
        %2285 = vmatprep.subr.bf16.mxu0 0
        %2286 = vmatpush1.bf16.msra.mxu0 0
        %2287 = vmatprep.subr.bf16.mxu0 0
        %2288 = vmatpush1.bf16.msra.mxu0 0
        %2289 = vmatprep.subr.bf16.mxu0 0
        %2290 = vmatpush1.bf16.msra.mxu0 0
        %2291 = vmatprep.subr.bf16.mxu0 0
        %2292 = vmatpush1.bf16.msra.mxu0 0
        %2293 = vmatprep.subr.bf16.mxu0 0
        %2294 = vmatpush1.bf16.msra.mxu0 0
        %2295 = vmatprep.subr.bf16.mxu0 0
        %2296 = vmatpush1.bf16.msra.mxu0 0
        %2297 = vmatprep.subr.bf16.mxu0 0
        %2298 = vmatpush1.bf16.msra.mxu0 0
        %2299 = vmatprep.subr.bf16.mxu0 0
        %2300 = vmatpush1.bf16.msra.mxu0 0
        %2301 = vmatprep.subr.bf16.mxu0 0
        %2302 = vmatpush1.bf16.msra.mxu0 0
        %2303 = vmatprep.subr.bf16.mxu0 0
        %2304 = vmatpush1.bf16.msra.mxu0 0
        %2305 = vmatprep.subr.bf16.mxu0 0
        %2306 = vmatpush1.bf16.msra.mxu0 0
        %2307 = vmatprep.mubr.bf16.mxu0 0
        %2308 = vmatmul.mubr.bf16.gmra.mrb[0].mxu0 %v2230
        %v2309 = vpop.f32.mrb[0].mxu0
        %v2310 = vadd.f32 %v2217, %v2309
        %v2311 = vpop.f32.mrb[0].mxu0
        %v2312 = vadd.f32 %v2217, %v2311
        %v2313 = vpop.f32.mrb[0].mxu0
        %v2314 = vadd.f32 %v2222, %v2313
        %v2315 = vpop.f32.mrb[0].mxu0
        %v2316 = vadd.f32 %v2222, %v2315
        %2317 = vdwg.mxu0
        %v2318 = vxor.u32 %v2267, 2147483648
        %v2319 = vxor.u32 %v2269, 2147483648
        %v2320 = vxor.u32 %v2310, 2147483648
        %v2321 = vxor.u32 %v2312, 2147483648
        %v2322 = vxor.u32 %v2271, 2147483648
        %v2323 = vxor.u32 %v2273, 2147483648
        %v2324 = vxor.u32 %v2314, 2147483648
        %v2325 = vxor.u32 %v2316, 2147483648
        %v2326 = vmul.f32 %v2318, 1.442695
        %v2327 = vpow.pop %v2326
        %v2328 = vmul.f32 %v2319, 1.442695
        %v2329 = vpow.pop %v2328
        %v2330 = vmul.f32 %v2320, 1.442695
        %v2331 = vpow.pop %v2330
        %v2332 = vmul.f32 %v2321, 1.442695
        %v2333 = vpow.pop %v2332
        %v2334 = vmul.f32 %v2322, 1.442695
        %v2335 = vpow.pop %v2334
        %v2336 = vmul.f32 %v2323, 1.442695
        %v2337 = vpow.pop %v2336
        %v2338 = vmul.f32 %v2324, 1.442695
        %v2339 = vpow.pop %v2338
        %v2340 = vmul.f32 %v2325, 1.442695
        %v2341 = vpow.pop %v2340
        %v2342 = vadd.f32 %v2327, 1.0
        %v2343 = vadd.f32 %v2329, 1.0
        %v2344 = vadd.f32 %v2331, 1.0
        %v2345 = vadd.f32 %v2333, 1.0
        %v2346 = vadd.f32 %v2335, 1.0
        %v2347 = vadd.f32 %v2337, 1.0
        %v2348 = vadd.f32 %v2339, 1.0
        %v2349 = vadd.f32 %v2341, 1.0
        %v2350 = vrcp.pop %v2342
        %v2351 = vmul.f32 1.0, %v2350
        %v2352 = vrcp.pop %v2343
        %v2353 = vmul.f32 1.0, %v2352
        %v2354 = vrcp.pop %v2344
        %v2355 = vmul.f32 1.0, %v2354
        %v2356 = vrcp.pop %v2345
        %v2357 = vmul.f32 1.0, %v2356
        %v2358 = vrcp.pop %v2346
        %v2359 = vmul.f32 1.0, %v2358
        %v2360 = vrcp.pop %v2347
        %v2361 = vmul.f32 1.0, %v2360
        %v2362 = vrcp.pop %v2348
        %v2363 = vmul.f32 1.0, %v2362
        %v2364 = vrcp.pop %v2349
        %v2365 = vmul.f32 1.0, %v2364
        %2366 = vst [vmem:[%s339] sm:$0xff] %v2351
        %2367 = vst [vmem:[%s339 + $0x8] sm:$0xff] %v2353
        %2368 = vst [vmem:[%s339 + $0x10] sm:$0xff] %v2359
        %2369 = vst [vmem:[%s339 + $0x18] sm:$0xff] %v2361
        %s2370 = scalar_lea.vmem %s339, 32 [#allocation9]
        %2371 = vst [vmem:[%s2370] sm:$0xff] %v2355
        %2372 = vst [vmem:[%s2370 + $0x8] sm:$0xff] %v2357
        %2373 = vst [vmem:[%s2370 + $0x10] sm:$0xff] %v2363
        %2374 = vst [vmem:[%s2370 + $0x18] sm:$0xff] %v2365
        %s2375 = sand.u32 %s207, 1
        %s2376 = scalar_lea.sflag [#allocation6], %s2375
        %s2377 = sand.u32 %s207, 1
        %s2378 = smul.addr %s2377, 64
        %s2379 = scalar_lea.vmem [#allocation9], %s2378
        // Predicated region
        $region61: #{tpu_custom_call.1} parent=51 // pred_check
          %p2380 = pneg %p217
        $region62: #{tpu_custom_call.1} parent=51 // pred_check_branch
          %2382 = sbr.rel (%p2380) target = $region64
        $region63: #{tpu_custom_call.1} parent=51 // pred_region
          %s2383 = smul.u32 2, %s26
          %s2385 = ssub.s32 1024, 1024
          %2386 = vsyncadd %s2376, %s2385
          %s2387 = smul.addr %s2383, 4
          %s2388 = smul.addr %s2387, 128
          %s2389 = scalar_lea.hbm %s8, %s2388
          %s2390 = sshll.u32 %s2379, 4
          %s2391 = int_to_ptr.vmem [resolvable:$true] %s2390
          %2396 = dma.vmem_to_hbm [thread:$0]  %s2391, 1024, %s2389, %s2376, 256, 256, 16
        $region64: #{tpu_custom_call.1} parent=51 // pred_fallthru
          _
      $region52: #{tpu_custom_call.1} parent=5 // pred_fallthru
        _
      %p2397 = scmp.le.s32.totalorder 2, %s21
      // Predicated region
      $region65: #{tpu_custom_call.1} parent=5 // pred_check
        %p2398 = pneg %p2397
      $region66: #{tpu_custom_call.1} parent=5 // pred_check_branch
        %2400 = sbr.rel (%p2398) target = $region68
      $region67: #{tpu_custom_call.1} parent=5 // pred_region
        %s2401 = ssub.s32 %s21, 2
        // Predicated region
        $region69: #{tpu_custom_call.1} parent=67 // pred_check
          %p2402 = pneg %p223
        $region70: #{tpu_custom_call.1} parent=67 // pred_check_branch
          %2404 = sbr.rel (%p2402) target = $region72
        $region71: #{tpu_custom_call.1} parent=67 // pred_region
          %s2405 = sand.u32 %s208, 1
          %s2406 = scalar_lea.sflag [#allocation6], %s2405
          %s2407 = sand.u32 %s208, 1
          %s2408 = smul.addr %s2407, 64
          %s2409 = scalar_lea.vmem [#allocation9], %s2408
          %2410 = dma.done %s2406, 1024
        $region72: #{tpu_custom_call.1} parent=67 // pred_fallthru
          _
      $region68: #{tpu_custom_call.1} parent=5 // pred_fallthru
        _
    $region6: #{tpu_custom_call.1} parent=1 // loop_footer
      %s25 = sadd.s32 1, %s21
    $region7: #{tpu_custom_call.1} parent=1 // loop_footer_branch
      %20 = sbr.rel target = $region3
    $region8: #{tpu_custom_call.1} parent=1 // loop_exit
      _
    %2411 = vsyncpa [#allocation5], 1
    %s2412 = scalar_lea.sflag [#allocation5], 1
    %2413 = vsyncpa %s2412, 1
    %2414 = vsyncpa [#allocation8], 1
    %2415 = vsyncpa [#allocation6], 1
    %s2416 = scalar_lea.sflag [#allocation6], 1
    %2417 = vsyncpa %s2416, 1

</llo_original>
